<compile_context>
chip_gen: v7x
topology: tpu7x:2x2x1
jax: 0.10.0
libtpu: 0.0.40
codegen_flags: <defaults>
</compile_context>

<pallas_src>
import jax
import jax.numpy as jnp
import numpy as np
from jax.experimental import pallas as pl
from jax.experimental.pallas import tpu as pltpu


# ------------------------------ fused kernel --------------------------------

def net_kernel(x4_ref, w1b_ref, b1p_ref, w2m_ref, b2p_ref,
               fw1_ref, fb1_ref, fw2_ref, fb2_ref, fw3_ref, fb3_ref,
               out_ref):
    """Entire forward pass for one sample (grid axis = batch)."""
    # ---------- conv1 as banded MXU GEMM over 4 row-phases ----------
    # x4_ref[0, s4, a, w] = x[4*a + s4, w]  (row-decimated input, block (1,4,14,28))
    # conv1 output row r = 4*m + u  ->  phase-u GEMM row m.
    w1b = w1b_ref[...]                                            # (140, 144)

    def conv1_phase(u):
        lhs = jnp.concatenate(
            [x4_ref[0, (u + dy) % 4, (u + dy) // 4:(u + dy) // 4 + 13, :]
             for dy in range(5)], axis=1)                         # (13, 140)
        # output lanes: s*6 + c   (s = conv1 width index, c = channel)
        return jnp.dot(lhs, w1b, preferred_element_type=jnp.float32)  # (13, 144)

    o_u = [conv1_phase(u) for u in range(4)]
    # 2x2 pool, row direction: pooled row 2m   <- conv rows 4m,   4m+1
    #                          pooled row 2m+1 <- conv rows 4m+2, 4m+3
    pre_e = jnp.maximum(o_u[0], o_u[1])                           # (13, 144)
    pre_o = jnp.maximum(o_u[2], o_u[3])
    # 2x2 pool, column direction: lane l pairs with lane l+6; then bias + ReLU.
    b1p = b1p_ref[...]                                            # (1, 138)
    p1_e = jnp.maximum(jnp.maximum(pre_e[:, 0:138], pre_e[:, 6:144]) + b1p, 0.0)
    p1_o = jnp.maximum(jnp.maximum(pre_o[:, 0:138], pre_o[:, 6:144]) + b1p, 0.0)
    # p1_e[m, 12*w + c] = pooled1[c, 2m,   w]   (valid lanes: l % 12 < 6)
    # p1_o[m, 12*w + c] = pooled1[c, 2m+1, w]
    p1 = (p1_e, p1_o)

    # ---------- conv2 as banded MXU GEMM over 2 row-parities ----------
    w2m = w2m_ref[...]                                            # (690, 128)

    def conv2_rows(parity):
        # conv2 output row i = 2*hh + parity needs pooled1 rows i + dy.
        lhs = jnp.concatenate(
            [p1[(parity + dy) % 2][(parity + dy) // 2:(parity + dy) // 2 + 11, :]
             for dy in range(5)], axis=1)                         # (11, 690)
        # output lanes: j*16 + co   (j = conv2 width index, co = channel)
        return jnp.dot(lhs, w2m, preferred_element_type=jnp.float32)  # (11, 128)

    q_e = conv2_rows(0)                                           # rows 2*hh
    q_o = conv2_rows(1)                                           # rows 2*hh + 1
    # 2x2 pool: rows via the parity pair, columns via lane pair l / l+16,
    # then bias + ReLU.
    r2 = jnp.maximum(q_e, q_o)                                    # (11, 128)
    feat = jnp.maximum(
        jnp.maximum(r2[:, 0:112], r2[:, 16:128]) + b2p_ref[...], 0.0)   # (11, 112)
    # feat[hh, 32*ww + co] = encoder_out[co, hh, ww]   (valid lanes: l % 32 < 16)

    # ---------- classifier: flatten along lanes + 3 GEMMs + log-softmax ----------
    frow = jnp.concatenate([feat[r:r + 1, :] for r in range(11)], axis=1)  # (1, 1232)
    h = jnp.maximum(
        jnp.dot(frow, fw1_ref[...], preferred_element_type=jnp.float32)
        + fb1_ref[...], 0.0)                                      # (1, 120)
    h = jnp.maximum(
        jnp.dot(h, fw2_ref[...], preferred_element_type=jnp.float32)
        + fb2_ref[...], 0.0)                                      # (1, 84)
    logits = (jnp.dot(h, fw3_ref[...], preferred_element_type=jnp.float32)
              + fb3_ref[...])                                     # (1, 19)
    m = jnp.max(logits, axis=-1, keepdims=True)
    s = logits - m
    lse = jnp.log(jnp.sum(jnp.exp(s), axis=-1, keepdims=True))
    out_ref[0] = s - lse


# ------------------------------ wrapper --------------------------------------

def net_forward(x, kp):
    """x: (N, 1, 56, 28) NCHW float32.  kp: prepared (kernel-layout) params."""
    n = x.shape[0]
    # 4-way row decimation of the input plane (feeds the fused pool-in-GEMM conv1).
    x4 = x[:, 0].reshape(n, 14, 4, 28).transpose(0, 2, 1, 3)      # (N, 4, 14, 28)

    weights = (kp["w1b"], kp["b1p"], kp["w2m"], kp["b2p"],
               kp["fw1"], kp["fb1"], kp["fw2"], kp["fb2"],
               kp["fw3"], kp["fb3"])
    w_specs = [pl.BlockSpec(w.shape, lambda i: (0, 0)) for w in weights]

    out = pl.pallas_call(
        net_kernel,
        out_shape=jax.ShapeDtypeStruct((n, 1, 19), jnp.float32),
        grid_spec=pltpu.PrefetchScalarGridSpec(
            num_scalar_prefetch=0,
            grid=(n,),
            in_specs=[pl.BlockSpec((1, 4, 14, 28), lambda i: (i, 0, 0, 0))]
                     + w_specs,
            out_specs=pl.BlockSpec((1, 1, 19), lambda i: (i, 0, 0)),
        ),
        compiler_params=pltpu.CompilerParams(
            dimension_semantics=("parallel",)),
    )(x4, *weights)
    return out.reshape(n, 19)


# ------------------------------ parameters -----------------------------------

def init_params(key):
    """Parameters in the original PyTorch layouts / default init distribution."""
    def uni(k, shape, fan_in):
        b = 1.0 / float(fan_in) ** 0.5
        return jax.random.uniform(k, shape, jnp.float32, -b, b)

    ks = jax.random.split(key, 10)
    return {
        "cw1": uni(ks[0], (6, 1, 5, 5), 25),     # Conv2d(1, 6, 5)
        "cb1": uni(ks[1], (6,), 25),
        "cw2": uni(ks[2], (16, 6, 5, 5), 150),   # Conv2d(6, 16, 5)
        "cb2": uni(ks[3], (16,), 150),
        "fw1": uni(ks[4], (120, 704), 704),      # Linear(16*11*4, 120)
        "fb1": uni(ks[5], (120,), 704),
        "fw2": uni(ks[6], (84, 120), 120),       # Linear(120, 84)
        "fb2": uni(ks[7], (84,), 120),
        "fw3": uni(ks[8], (19, 84), 84),         # Linear(84, 19)
        "fb3": uni(ks[9], (19,), 84),
    }


def prepare_params(p):
    """One-time host-side conversion from PyTorch layouts to fused-kernel layouts."""
    w1 = np.asarray(p["cw1"], np.float32)        # (6, 1, 5, 5)
    b1 = np.asarray(p["cb1"], np.float32)
    w2 = np.asarray(p["cw2"], np.float32)        # (16, 6, 5, 5)
    b2 = np.asarray(p["cb2"], np.float32)
    f1w = np.asarray(p["fw1"], np.float32)       # (120, 704) torch (out, in)
    f2w = np.asarray(p["fw2"], np.float32)
    f3w = np.asarray(p["fw3"], np.float32)

    # conv1 banded weight: LHS col = dy*28 + wa (absolute input column),
    #                      out col = s*6 + c    (conv1 width s, channel c)
    w1b = np.zeros((5 * 28, 24 * 6), np.float32)
    for dy in range(5):
        for s in range(24):
            for dx in range(5):
                for c in range(6):
                    w1b[dy * 28 + s + dx, s * 6 + c] = w1[c, 0, dy, dx]
    b1p = b1[np.arange(138) % 6][None, :]                        # (1, 138)

    # conv2 banded weight: LHS col = dy*138 + 12*w + c (pooled1 lane layout),
    #                      out col = j*16 + co        (conv2 width j, channel co)
    w2m = np.zeros((5 * 138, 8 * 16), np.float32)
    for dy in range(5):
        for j in range(8):
            for dx in range(5):
                w = j + dx
                for c in range(6):
                    for co in range(16):
                        w2m[dy * 138 + 12 * w + c, j * 16 + co] = w2[co, c, dy, dx]
    b2p = b2[np.arange(112) % 16][None, :]                       # (1, 112)

    # fc1 weight consumes the in-kernel feature row (flat = hh*112 + 32*ww + co)
    # in place of torch's NCHW flatten (flat = co*44 + hh*4 + ww); unused lanes
    # get zero rows so the don't-care pool lanes contribute nothing.
    fw1 = np.zeros((11 * 112, 120), np.float32)
    for hh in range(11):
        for ww in range(4):
            for co in range(16):
                fw1[hh * 112 + 32 * ww + co, :] = f1w[:, co * 44 + hh * 4 + ww]

    kp = dict(
        w1b=w1b, b1p=b1p, w2m=w2m, b2p=b2p,
        fw1=fw1, fb1=np.asarray(p["fb1"], np.float32)[None, :],
        fw2=f2w.T.copy(), fb2=np.asarray(p["fb2"], np.float32)[None, :],
        fw3=f3w.T.copy(), fb3=np.asarray(p["fb3"], np.float32)[None, :],
    )
    return {k: jnp.asarray(v) for k, v in kp.items()}


# ------------------------------ reference ------------------------------------

def reference_forward(x, p):
    """Pure-JAX (XLA) replica of the PyTorch module, for verification."""
    def conv(y, w, b):
        y = jax.lax.conv_general_dilated(
            y, w, (1, 1), "VALID", dimension_numbers=("NCHW", "OIHW", "NCHW"))
        return y + b[None, :, None, None]

    def pool_relu(y):
        y = jax.lax.reduce_window(y, -jnp.inf, jax.lax.max,
                                  (1, 1, 2, 2), (1, 1, 2, 2), "VALID")
        return jnp.maximum(y, 0.0)

    y = pool_relu(conv(x, p["cw1"], p["cb1"]))
    y = pool_relu(conv(y, p["cw2"], p["cb2"]))
    f = y.reshape(y.shape[0], 16 * 11 * 4)
    h = jnp.maximum(f @ p["fw1"].T + p["fb1"], 0.0)
    h = jnp.maximum(h @ p["fw2"].T + p["fb2"], 0.0)
    logits = h @ p["fw3"].T + p["fb3"]
    return jax.nn.log_softmax(logits, axis=1)


# ------------------------------ main ------------------------------------------

if __name__ == "__main__":
    key = jax.random.PRNGKey(0)
    kx, kparam = jax.random.split(key)
    # input spatial size (56, 28) is what makes the torch flatten 16*11*4 valid
    x = jax.random.normal(kx, (2, 1, 56, 28), jnp.float32)
    params = init_params(kparam)
    kparams = prepare_params(params)

    fwd = jax.jit(net_forward)
    out = jax.block_until_ready(fwd(x, kparams))

    assert out.shape == (2, 19), out.shape
    # rows of a log-softmax must exponentiate-sum to 1
    assert bool(jnp.allclose(jnp.exp(out).sum(axis=1), 1.0, atol=1e-4))
    # match the XLA reference of the original torch module
    ref = jax.block_until_ready(reference_forward(x, params))
    assert bool(jnp.allclose(out, ref, atol=1e-3, rtol=1e-3)), \
        float(jnp.max(jnp.abs(out - ref)))
    print("KERNEL_OK")
</pallas_src>

<mosaic_0001>
module attributes {stable_mosaic.version = 11 : i64} {
  func.func @net_kernel(%arg0: i32, %arg1: memref<1x4x14x28xf32, #tpu.memory_space<vmem>>, %arg2: memref<140x144xf32, #tpu.memory_space<vmem>>, %arg3: memref<1x138xf32, #tpu.memory_space<vmem>>, %arg4: memref<690x128xf32, #tpu.memory_space<vmem>>, %arg5: memref<1x112xf32, #tpu.memory_space<vmem>>, %arg6: memref<1232x120xf32, #tpu.memory_space<vmem>>, %arg7: memref<1x120xf32, #tpu.memory_space<vmem>>, %arg8: memref<120x84xf32, #tpu.memory_space<vmem>>, %arg9: memref<1x84xf32, #tpu.memory_space<vmem>>, %arg10: memref<84x19xf32, #tpu.memory_space<vmem>>, %arg11: memref<1x19xf32, #tpu.memory_space<vmem>>, %arg12: memref<1x1x19xf32, #tpu.memory_space<vmem>>) attributes {dimension_semantics = [#tpu.dimension_semantics<parallel>], iteration_bounds = array<i64: 2>, scalar_prefetch = 0 : i64, scratch_operands = 0 : i64, tpu.core_type = #tpu.core_type<tc>, window_params = [{transform_indices = @transform_0, window_bounds = array<i64: 1, 4, 14, 28>}, {pipeline_mode = #tpu.pipeline_mode<synchronous>, transform_indices = @transform_1, window_bounds = array<i64: 140, 144>}, {pipeline_mode = #tpu.pipeline_mode<synchronous>, transform_indices = @transform_2, window_bounds = array<i64: 1, 138>}, {pipeline_mode = #tpu.pipeline_mode<synchronous>, transform_indices = @transform_3, window_bounds = array<i64: 690, 128>}, {pipeline_mode = #tpu.pipeline_mode<synchronous>, transform_indices = @transform_4, window_bounds = array<i64: 1, 112>}, {pipeline_mode = #tpu.pipeline_mode<synchronous>, transform_indices = @transform_5, window_bounds = array<i64: 1232, 120>}, {pipeline_mode = #tpu.pipeline_mode<synchronous>, transform_indices = @transform_6, window_bounds = array<i64: 1, 120>}, {pipeline_mode = #tpu.pipeline_mode<synchronous>, transform_indices = @transform_7, window_bounds = array<i64: 120, 84>}, {pipeline_mode = #tpu.pipeline_mode<synchronous>, transform_indices = @transform_8, window_bounds = array<i64: 1, 84>}, {pipeline_mode = #tpu.pipeline_mode<synchronous>, transform_indices = @transform_9, window_bounds = array<i64: 84, 19>}, {pipeline_mode = #tpu.pipeline_mode<synchronous>, transform_indices = @transform_10, window_bounds = array<i64: 1, 19>}, {transform_indices = @transform_11, window_bounds = array<i64: 1, 1, 19>}]} {
    %c0 = arith.constant 0 : index
    %c0_0 = arith.constant 0 : index
    %0 = vector.load %arg2[%c0, %c0_0] : memref<140x144xf32, #tpu.memory_space<vmem>>, vector<140x144xf32>
    %c0_1 = arith.constant 0 : index
    %c0_2 = arith.constant 0 : index
    %c0_3 = arith.constant 0 : index
    %c0_4 = arith.constant 0 : index
    %1 = vector.load %arg1[%c0_1, %c0_2, %c0_3, %c0_4] : memref<1x4x14x28xf32, #tpu.memory_space<vmem>>, vector<1x1x13x28xf32>
    %2 = vector.shape_cast %1 : vector<1x1x13x28xf32> to vector<13x28xf32>
    %c0_5 = arith.constant 0 : index
    %c1 = arith.constant 1 : index
    %c0_6 = arith.constant 0 : index
    %c0_7 = arith.constant 0 : index
    %3 = vector.load %arg1[%c0_5, %c1, %c0_6, %c0_7] : memref<1x4x14x28xf32, #tpu.memory_space<vmem>>, vector<1x1x13x28xf32>
    %4 = vector.shape_cast %3 : vector<1x1x13x28xf32> to vector<13x28xf32>
    %c0_8 = arith.constant 0 : index
    %c2 = arith.constant 2 : index
    %c0_9 = arith.constant 0 : index
    %c0_10 = arith.constant 0 : index
    %5 = vector.load %arg1[%c0_8, %c2, %c0_9, %c0_10] : memref<1x4x14x28xf32, #tpu.memory_space<vmem>>, vector<1x1x13x28xf32>
    %6 = vector.shape_cast %5 : vector<1x1x13x28xf32> to vector<13x28xf32>
    %c0_11 = arith.constant 0 : index
    %c3 = arith.constant 3 : index
    %c0_12 = arith.constant 0 : index
    %c0_13 = arith.constant 0 : index
    %7 = vector.load %arg1[%c0_11, %c3, %c0_12, %c0_13] : memref<1x4x14x28xf32, #tpu.memory_space<vmem>>, vector<1x1x13x28xf32>
    %8 = vector.shape_cast %7 : vector<1x1x13x28xf32> to vector<13x28xf32>
    %c0_14 = arith.constant 0 : index
    %c0_15 = arith.constant 0 : index
    %c1_16 = arith.constant 1 : index
    %c0_17 = arith.constant 0 : index
    %9 = vector.load %arg1[%c0_14, %c0_15, %c1_16, %c0_17] : memref<1x4x14x28xf32, #tpu.memory_space<vmem>>, vector<1x1x13x28xf32>
    %10 = vector.shape_cast %9 : vector<1x1x13x28xf32> to vector<13x28xf32>
    %11 = tpu.concatenate %2, %4, %6, %8, %10 in 1 : vector<13x28xf32>, vector<13x28xf32>, vector<13x28xf32>, vector<13x28xf32>, vector<13x28xf32> -> vector<13x140xf32>
    %cst = arith.constant dense<0.000000e+00> : vector<13x144xf32>
    %12 = tpu.matmul %11, %0, %cst {dimension_numbers = #tpu.dot_dimension_numbers<[1], [0], [0], [1], [0, 0, 1, 1], [], []>} : vector<13x140xf32>, vector<140x144xf32>, vector<13x144xf32> -> vector<13x144xf32>
    %c0_18 = arith.constant 0 : index
    %c1_19 = arith.constant 1 : index
    %c0_20 = arith.constant 0 : index
    %c0_21 = arith.constant 0 : index
    %13 = vector.load %arg1[%c0_18, %c1_19, %c0_20, %c0_21] : memref<1x4x14x28xf32, #tpu.memory_space<vmem>>, vector<1x1x13x28xf32>
    %14 = vector.shape_cast %13 : vector<1x1x13x28xf32> to vector<13x28xf32>
    %c0_22 = arith.constant 0 : index
    %c2_23 = arith.constant 2 : index
    %c0_24 = arith.constant 0 : index
    %c0_25 = arith.constant 0 : index
    %15 = vector.load %arg1[%c0_22, %c2_23, %c0_24, %c0_25] : memref<1x4x14x28xf32, #tpu.memory_space<vmem>>, vector<1x1x13x28xf32>
    %16 = vector.shape_cast %15 : vector<1x1x13x28xf32> to vector<13x28xf32>
    %c0_26 = arith.constant 0 : index
    %c3_27 = arith.constant 3 : index
    %c0_28 = arith.constant 0 : index
    %c0_29 = arith.constant 0 : index
    %17 = vector.load %arg1[%c0_26, %c3_27, %c0_28, %c0_29] : memref<1x4x14x28xf32, #tpu.memory_space<vmem>>, vector<1x1x13x28xf32>
    %18 = vector.shape_cast %17 : vector<1x1x13x28xf32> to vector<13x28xf32>
    %c0_30 = arith.constant 0 : index
    %c0_31 = arith.constant 0 : index
    %c1_32 = arith.constant 1 : index
    %c0_33 = arith.constant 0 : index
    %19 = vector.load %arg1[%c0_30, %c0_31, %c1_32, %c0_33] : memref<1x4x14x28xf32, #tpu.memory_space<vmem>>, vector<1x1x13x28xf32>
    %20 = vector.shape_cast %19 : vector<1x1x13x28xf32> to vector<13x28xf32>
    %c0_34 = arith.constant 0 : index
    %c1_35 = arith.constant 1 : index
    %c1_36 = arith.constant 1 : index
    %c0_37 = arith.constant 0 : index
    %21 = vector.load %arg1[%c0_34, %c1_35, %c1_36, %c0_37] : memref<1x4x14x28xf32, #tpu.memory_space<vmem>>, vector<1x1x13x28xf32>
    %22 = vector.shape_cast %21 : vector<1x1x13x28xf32> to vector<13x28xf32>
    %23 = tpu.concatenate %14, %16, %18, %20, %22 in 1 : vector<13x28xf32>, vector<13x28xf32>, vector<13x28xf32>, vector<13x28xf32>, vector<13x28xf32> -> vector<13x140xf32>
    %cst_38 = arith.constant dense<0.000000e+00> : vector<13x144xf32>
    %24 = tpu.matmul %23, %0, %cst_38 {dimension_numbers = #tpu.dot_dimension_numbers<[1], [0], [0], [1], [0, 0, 1, 1], [], []>} : vector<13x140xf32>, vector<140x144xf32>, vector<13x144xf32> -> vector<13x144xf32>
    %c0_39 = arith.constant 0 : index
    %c2_40 = arith.constant 2 : index
    %c0_41 = arith.constant 0 : index
    %c0_42 = arith.constant 0 : index
    %25 = vector.load %arg1[%c0_39, %c2_40, %c0_41, %c0_42] : memref<1x4x14x28xf32, #tpu.memory_space<vmem>>, vector<1x1x13x28xf32>
    %26 = vector.shape_cast %25 : vector<1x1x13x28xf32> to vector<13x28xf32>
    %c0_43 = arith.constant 0 : index
    %c3_44 = arith.constant 3 : index
    %c0_45 = arith.constant 0 : index
    %c0_46 = arith.constant 0 : index
    %27 = vector.load %arg1[%c0_43, %c3_44, %c0_45, %c0_46] : memref<1x4x14x28xf32, #tpu.memory_space<vmem>>, vector<1x1x13x28xf32>
    %28 = vector.shape_cast %27 : vector<1x1x13x28xf32> to vector<13x28xf32>
    %c0_47 = arith.constant 0 : index
    %c0_48 = arith.constant 0 : index
    %c1_49 = arith.constant 1 : index
    %c0_50 = arith.constant 0 : index
    %29 = vector.load %arg1[%c0_47, %c0_48, %c1_49, %c0_50] : memref<1x4x14x28xf32, #tpu.memory_space<vmem>>, vector<1x1x13x28xf32>
    %30 = vector.shape_cast %29 : vector<1x1x13x28xf32> to vector<13x28xf32>
    %c0_51 = arith.constant 0 : index
    %c1_52 = arith.constant 1 : index
    %c1_53 = arith.constant 1 : index
    %c0_54 = arith.constant 0 : index
    %31 = vector.load %arg1[%c0_51, %c1_52, %c1_53, %c0_54] : memref<1x4x14x28xf32, #tpu.memory_space<vmem>>, vector<1x1x13x28xf32>
    %32 = vector.shape_cast %31 : vector<1x1x13x28xf32> to vector<13x28xf32>
    %c0_55 = arith.constant 0 : index
    %c2_56 = arith.constant 2 : index
    %c1_57 = arith.constant 1 : index
    %c0_58 = arith.constant 0 : index
    %33 = vector.load %arg1[%c0_55, %c2_56, %c1_57, %c0_58] : memref<1x4x14x28xf32, #tpu.memory_space<vmem>>, vector<1x1x13x28xf32>
    %34 = vector.shape_cast %33 : vector<1x1x13x28xf32> to vector<13x28xf32>
    %35 = tpu.concatenate %26, %28, %30, %32, %34 in 1 : vector<13x28xf32>, vector<13x28xf32>, vector<13x28xf32>, vector<13x28xf32>, vector<13x28xf32> -> vector<13x140xf32>
    %cst_59 = arith.constant dense<0.000000e+00> : vector<13x144xf32>
    %36 = tpu.matmul %35, %0, %cst_59 {dimension_numbers = #tpu.dot_dimension_numbers<[1], [0], [0], [1], [0, 0, 1, 1], [], []>} : vector<13x140xf32>, vector<140x144xf32>, vector<13x144xf32> -> vector<13x144xf32>
    %c0_60 = arith.constant 0 : index
    %c3_61 = arith.constant 3 : index
    %c0_62 = arith.constant 0 : index
    %c0_63 = arith.constant 0 : index
    %37 = vector.load %arg1[%c0_60, %c3_61, %c0_62, %c0_63] : memref<1x4x14x28xf32, #tpu.memory_space<vmem>>, vector<1x1x13x28xf32>
    %38 = vector.shape_cast %37 : vector<1x1x13x28xf32> to vector<13x28xf32>
    %c0_64 = arith.constant 0 : index
    %c0_65 = arith.constant 0 : index
    %c1_66 = arith.constant 1 : index
    %c0_67 = arith.constant 0 : index
    %39 = vector.load %arg1[%c0_64, %c0_65, %c1_66, %c0_67] : memref<1x4x14x28xf32, #tpu.memory_space<vmem>>, vector<1x1x13x28xf32>
    %40 = vector.shape_cast %39 : vector<1x1x13x28xf32> to vector<13x28xf32>
    %c0_68 = arith.constant 0 : index
    %c1_69 = arith.constant 1 : index
    %c1_70 = arith.constant 1 : index
    %c0_71 = arith.constant 0 : index
    %41 = vector.load %arg1[%c0_68, %c1_69, %c1_70, %c0_71] : memref<1x4x14x28xf32, #tpu.memory_space<vmem>>, vector<1x1x13x28xf32>
    %42 = vector.shape_cast %41 : vector<1x1x13x28xf32> to vector<13x28xf32>
    %c0_72 = arith.constant 0 : index
    %c2_73 = arith.constant 2 : index
    %c1_74 = arith.constant 1 : index
    %c0_75 = arith.constant 0 : index
    %43 = vector.load %arg1[%c0_72, %c2_73, %c1_74, %c0_75] : memref<1x4x14x28xf32, #tpu.memory_space<vmem>>, vector<1x1x13x28xf32>
    %44 = vector.shape_cast %43 : vector<1x1x13x28xf32> to vector<13x28xf32>
    %c0_76 = arith.constant 0 : index
    %c3_77 = arith.constant 3 : index
    %c1_78 = arith.constant 1 : index
    %c0_79 = arith.constant 0 : index
    %45 = vector.load %arg1[%c0_76, %c3_77, %c1_78, %c0_79] : memref<1x4x14x28xf32, #tpu.memory_space<vmem>>, vector<1x1x13x28xf32>
    %46 = vector.shape_cast %45 : vector<1x1x13x28xf32> to vector<13x28xf32>
    %47 = tpu.concatenate %38, %40, %42, %44, %46 in 1 : vector<13x28xf32>, vector<13x28xf32>, vector<13x28xf32>, vector<13x28xf32>, vector<13x28xf32> -> vector<13x140xf32>
    %cst_80 = arith.constant dense<0.000000e+00> : vector<13x144xf32>
    %48 = tpu.matmul %47, %0, %cst_80 {dimension_numbers = #tpu.dot_dimension_numbers<[1], [0], [0], [1], [0, 0, 1, 1], [], []>} : vector<13x140xf32>, vector<140x144xf32>, vector<13x144xf32> -> vector<13x144xf32>
    %49 = arith.maximumf %12, %24 : vector<13x144xf32>
    %50 = arith.maximumf %36, %48 : vector<13x144xf32>
    %c0_81 = arith.constant 0 : index
    %c0_82 = arith.constant 0 : index
    %51 = vector.load %arg3[%c0_81, %c0_82] : memref<1x138xf32, #tpu.memory_space<vmem>>, vector<1x138xf32>
    %52 = vector.extract_strided_slice %49 {offsets = [0, 0], sizes = [13, 138], strides = [1, 1]} : vector<13x144xf32> to vector<13x138xf32>
    %53 = vector.extract_strided_slice %49 {offsets = [0, 6], sizes = [13, 138], strides = [1, 1]} : vector<13x144xf32> to vector<13x138xf32>
    %54 = arith.maximumf %52, %53 : vector<13x138xf32>
    %55 = vector.broadcast %51 : vector<1x138xf32> to vector<13x138xf32>
    %56 = arith.addf %54, %55 : vector<13x138xf32>
    %cst_83 = arith.constant 0.000000e+00 : f32
    %57 = vector.broadcast %cst_83 : f32 to vector<13x138xf32>
    %58 = arith.maximumf %56, %57 : vector<13x138xf32>
    %59 = vector.extract_strided_slice %50 {offsets = [0, 0], sizes = [13, 138], strides = [1, 1]} : vector<13x144xf32> to vector<13x138xf32>
    %60 = vector.extract_strided_slice %50 {offsets = [0, 6], sizes = [13, 138], strides = [1, 1]} : vector<13x144xf32> to vector<13x138xf32>
    %61 = arith.maximumf %59, %60 : vector<13x138xf32>
    %62 = vector.broadcast %51 : vector<1x138xf32> to vector<13x138xf32>
    %63 = arith.addf %61, %62 : vector<13x138xf32>
    %cst_84 = arith.constant 0.000000e+00 : f32
    %64 = vector.broadcast %cst_84 : f32 to vector<13x138xf32>
    %65 = arith.maximumf %63, %64 : vector<13x138xf32>
    %c0_85 = arith.constant 0 : index
    %c0_86 = arith.constant 0 : index
    %66 = vector.load %arg4[%c0_85, %c0_86] : memref<690x128xf32, #tpu.memory_space<vmem>>, vector<690x128xf32>
    %67 = vector.extract_strided_slice %58 {offsets = [0, 0], sizes = [11, 138], strides = [1, 1]} : vector<13x138xf32> to vector<11x138xf32>
    %68 = vector.extract_strided_slice %65 {offsets = [0, 0], sizes = [11, 138], strides = [1, 1]} : vector<13x138xf32> to vector<11x138xf32>
    %69 = vector.extract_strided_slice %58 {offsets = [1, 0], sizes = [11, 138], strides = [1, 1]} : vector<13x138xf32> to vector<11x138xf32>
    %70 = vector.extract_strided_slice %65 {offsets = [1, 0], sizes = [11, 138], strides = [1, 1]} : vector<13x138xf32> to vector<11x138xf32>
    %71 = vector.extract_strided_slice %58 {offsets = [2, 0], sizes = [11, 138], strides = [1, 1]} : vector<13x138xf32> to vector<11x138xf32>
    %72 = tpu.concatenate %67, %68, %69, %70, %71 in 1 : vector<11x138xf32>, vector<11x138xf32>, vector<11x138xf32>, vector<11x138xf32>, vector<11x138xf32> -> vector<11x690xf32>
    %cst_87 = arith.constant dense<0.000000e+00> : vector<11x128xf32>
    %73 = tpu.matmul %72, %66, %cst_87 {dimension_numbers = #tpu.dot_dimension_numbers<[1], [0], [0], [1], [0, 0, 1, 1], [], []>} : vector<11x690xf32>, vector<690x128xf32>, vector<11x128xf32> -> vector<11x128xf32>
    %74 = vector.extract_strided_slice %65 {offsets = [0, 0], sizes = [11, 138], strides = [1, 1]} : vector<13x138xf32> to vector<11x138xf32>
    %75 = vector.extract_strided_slice %58 {offsets = [1, 0], sizes = [11, 138], strides = [1, 1]} : vector<13x138xf32> to vector<11x138xf32>
    %76 = vector.extract_strided_slice %65 {offsets = [1, 0], sizes = [11, 138], strides = [1, 1]} : vector<13x138xf32> to vector<11x138xf32>
    %77 = vector.extract_strided_slice %58 {offsets = [2, 0], sizes = [11, 138], strides = [1, 1]} : vector<13x138xf32> to vector<11x138xf32>
    %78 = vector.extract_strided_slice %65 {offsets = [2, 0], sizes = [11, 138], strides = [1, 1]} : vector<13x138xf32> to vector<11x138xf32>
    %79 = tpu.concatenate %74, %75, %76, %77, %78 in 1 : vector<11x138xf32>, vector<11x138xf32>, vector<11x138xf32>, vector<11x138xf32>, vector<11x138xf32> -> vector<11x690xf32>
    %cst_88 = arith.constant dense<0.000000e+00> : vector<11x128xf32>
    %80 = tpu.matmul %79, %66, %cst_88 {dimension_numbers = #tpu.dot_dimension_numbers<[1], [0], [0], [1], [0, 0, 1, 1], [], []>} : vector<11x690xf32>, vector<690x128xf32>, vector<11x128xf32> -> vector<11x128xf32>
    %81 = arith.maximumf %73, %80 : vector<11x128xf32>
    %82 = vector.extract_strided_slice %81 {offsets = [0, 0], sizes = [11, 112], strides = [1, 1]} : vector<11x128xf32> to vector<11x112xf32>
    %83 = vector.extract_strided_slice %81 {offsets = [0, 16], sizes = [11, 112], strides = [1, 1]} : vector<11x128xf32> to vector<11x112xf32>
    %84 = arith.maximumf %82, %83 : vector<11x112xf32>
    %c0_89 = arith.constant 0 : index
    %c0_90 = arith.constant 0 : index
    %85 = vector.load %arg5[%c0_89, %c0_90] : memref<1x112xf32, #tpu.memory_space<vmem>>, vector<1x112xf32>
    %86 = vector.broadcast %85 : vector<1x112xf32> to vector<11x112xf32>
    %87 = arith.addf %84, %86 : vector<11x112xf32>
    %cst_91 = arith.constant 0.000000e+00 : f32
    %88 = vector.broadcast %cst_91 : f32 to vector<11x112xf32>
    %89 = arith.maximumf %87, %88 : vector<11x112xf32>
    %90 = vector.extract_strided_slice %89 {offsets = [0, 0], sizes = [1, 112], strides = [1, 1]} : vector<11x112xf32> to vector<1x112xf32>
    %91 = vector.extract_strided_slice %89 {offsets = [1, 0], sizes = [1, 112], strides = [1, 1]} : vector<11x112xf32> to vector<1x112xf32>
    %92 = vector.extract_strided_slice %89 {offsets = [2, 0], sizes = [1, 112], strides = [1, 1]} : vector<11x112xf32> to vector<1x112xf32>
    %93 = vector.extract_strided_slice %89 {offsets = [3, 0], sizes = [1, 112], strides = [1, 1]} : vector<11x112xf32> to vector<1x112xf32>
    %94 = vector.extract_strided_slice %89 {offsets = [4, 0], sizes = [1, 112], strides = [1, 1]} : vector<11x112xf32> to vector<1x112xf32>
    %95 = vector.extract_strided_slice %89 {offsets = [5, 0], sizes = [1, 112], strides = [1, 1]} : vector<11x112xf32> to vector<1x112xf32>
    %96 = vector.extract_strided_slice %89 {offsets = [6, 0], sizes = [1, 112], strides = [1, 1]} : vector<11x112xf32> to vector<1x112xf32>
    %97 = vector.extract_strided_slice %89 {offsets = [7, 0], sizes = [1, 112], strides = [1, 1]} : vector<11x112xf32> to vector<1x112xf32>
    %98 = vector.extract_strided_slice %89 {offsets = [8, 0], sizes = [1, 112], strides = [1, 1]} : vector<11x112xf32> to vector<1x112xf32>
    %99 = vector.extract_strided_slice %89 {offsets = [9, 0], sizes = [1, 112], strides = [1, 1]} : vector<11x112xf32> to vector<1x112xf32>
    %100 = vector.extract_strided_slice %89 {offsets = [10, 0], sizes = [1, 112], strides = [1, 1]} : vector<11x112xf32> to vector<1x112xf32>
    %101 = tpu.concatenate %90, %91, %92, %93, %94, %95, %96, %97, %98, %99, %100 in 1 : vector<1x112xf32>, vector<1x112xf32>, vector<1x112xf32>, vector<1x112xf32>, vector<1x112xf32>, vector<1x112xf32>, vector<1x112xf32>, vector<1x112xf32>, vector<1x112xf32>, vector<1x112xf32>, vector<1x112xf32> -> vector<1x1232xf32>
    %c0_92 = arith.constant 0 : index
    %c0_93 = arith.constant 0 : index
    %102 = vector.load %arg6[%c0_92, %c0_93] : memref<1232x120xf32, #tpu.memory_space<vmem>>, vector<1232x120xf32>
    %cst_94 = arith.constant dense<0.000000e+00> : vector<1x120xf32>
    %103 = tpu.matmul %101, %102, %cst_94 {dimension_numbers = #tpu.dot_dimension_numbers<[1], [0], [0], [1], [0, 0, 1, 1], [], []>} : vector<1x1232xf32>, vector<1232x120xf32>, vector<1x120xf32> -> vector<1x120xf32>
    %c0_95 = arith.constant 0 : index
    %c0_96 = arith.constant 0 : index
    %104 = vector.load %arg7[%c0_95, %c0_96] : memref<1x120xf32, #tpu.memory_space<vmem>>, vector<1x120xf32>
    %105 = arith.addf %103, %104 : vector<1x120xf32>
    %cst_97 = arith.constant 0.000000e+00 : f32
    %106 = vector.broadcast %cst_97 : f32 to vector<1x120xf32>
    %107 = arith.maximumf %105, %106 : vector<1x120xf32>
    %c0_98 = arith.constant 0 : index
    %c0_99 = arith.constant 0 : index
    %108 = vector.load %arg8[%c0_98, %c0_99] : memref<120x84xf32, #tpu.memory_space<vmem>>, vector<120x84xf32>
    %cst_100 = arith.constant dense<0.000000e+00> : vector<1x84xf32>
    %109 = tpu.matmul %107, %108, %cst_100 {dimension_numbers = #tpu.dot_dimension_numbers<[1], [0], [0], [1], [0, 0, 1, 1], [], []>} : vector<1x120xf32>, vector<120x84xf32>, vector<1x84xf32> -> vector<1x84xf32>
    %c0_101 = arith.constant 0 : index
    %c0_102 = arith.constant 0 : index
    %110 = vector.load %arg9[%c0_101, %c0_102] : memref<1x84xf32, #tpu.memory_space<vmem>>, vector<1x84xf32>
    %111 = arith.addf %109, %110 : vector<1x84xf32>
    %cst_103 = arith.constant 0.000000e+00 : f32
    %112 = vector.broadcast %cst_103 : f32 to vector<1x84xf32>
    %113 = arith.maximumf %111, %112 : vector<1x84xf32>
    %c0_104 = arith.constant 0 : index
    %c0_105 = arith.constant 0 : index
    %114 = vector.load %arg10[%c0_104, %c0_105] : memref<84x19xf32, #tpu.memory_space<vmem>>, vector<84x19xf32>
    %cst_106 = arith.constant dense<0.000000e+00> : vector<1x19xf32>
    %115 = tpu.matmul %113, %114, %cst_106 {dimension_numbers = #tpu.dot_dimension_numbers<[1], [0], [0], [1], [0, 0, 1, 1], [], []>} : vector<1x84xf32>, vector<84x19xf32>, vector<1x19xf32> -> vector<1x19xf32>
    %c0_107 = arith.constant 0 : index
    %c0_108 = arith.constant 0 : index
    %116 = vector.load %arg11[%c0_107, %c0_108] : memref<1x19xf32, #tpu.memory_space<vmem>>, vector<1x19xf32>
    %117 = arith.addf %115, %116 : vector<1x19xf32>
    %cst_109 = arith.constant dense<0xFF800000> : vector<1xf32>
    %118 = vector.multi_reduction <maximumf>, %117, %cst_109 [1] : vector<1x19xf32> to vector<1xf32>
    %119 = vector.shape_cast %118 : vector<1xf32> to vector<1x1xf32>
    %120 = vector.broadcast %119 : vector<1x1xf32> to vector<1x19xf32>
    %121 = arith.subf %117, %120 : vector<1x19xf32>
    %122 = math.exp %121 : vector<1x19xf32>
    %cst_110 = arith.constant dense<0.000000e+00> : vector<1xf32>
    %123 = vector.multi_reduction <add>, %122, %cst_110 [1] : vector<1x19xf32> to vector<1xf32>
    %124 = vector.shape_cast %123 : vector<1xf32> to vector<1x1xf32>
    %125 = math.log %124 : vector<1x1xf32>
    %126 = vector.broadcast %125 : vector<1x1xf32> to vector<1x19xf32>
    %127 = arith.subf %121, %126 : vector<1x19xf32>
    %c0_111 = arith.constant 0 : index
    %c0_112 = arith.constant 0 : index
    %c0_113 = arith.constant 0 : index
    %128 = vector.load %arg12[%c0_111, %c0_112, %c0_113] : memref<1x1x19xf32, #tpu.memory_space<vmem>>, vector<1x1x19xf32>
    %129 = vector.shape_cast %128 : vector<1x1x19xf32> to vector<1x19xf32>
    %130 = vector.shape_cast %127 : vector<1x19xf32> to vector<1x1x19xf32>
    tpu.vector_store %arg12[%c0_111, %c0_112, %c0_113], %130 {strides = array<i32>} : memref<1x1x19xf32, #tpu.memory_space<vmem>>, vector<1x1x19xf32>,
    return
  }
  func.func @transform_0(%arg0: i32) -> (i32, i32, i32, i32) {
    %c0_i32 = arith.constant 0 : i32
    %c0_i32_0 = arith.constant 0 : i32
    %c0_i32_1 = arith.constant 0 : i32
    %c0_i32_2 = arith.constant 0 : i32
    return %arg0, %c0_i32, %c0_i32_0, %c0_i32_1 : i32, i32, i32, i32
  }
  func.func @transform_1(%arg0: i32) -> (i32, i32) {
    %c0_i32 = arith.constant 0 : i32
    %c0_i32_0 = arith.constant 0 : i32
    %c0_i32_1 = arith.constant 0 : i32
    return %c0_i32, %c0_i32_0 : i32, i32
  }
  func.func @transform_2(%arg0: i32) -> (i32, i32) {
    %c0_i32 = arith.constant 0 : i32
    %c0_i32_0 = arith.constant 0 : i32
    %c0_i32_1 = arith.constant 0 : i32
    return %c0_i32, %c0_i32_0 : i32, i32
  }
  func.func @transform_3(%arg0: i32) -> (i32, i32) {
    %c0_i32 = arith.constant 0 : i32
    %c0_i32_0 = arith.constant 0 : i32
    %c0_i32_1 = arith.constant 0 : i32
    return %c0_i32, %c0_i32_0 : i32, i32
  }
  func.func @transform_4(%arg0: i32) -> (i32, i32) {
    %c0_i32 = arith.constant 0 : i32
    %c0_i32_0 = arith.constant 0 : i32
    %c0_i32_1 = arith.constant 0 : i32
    return %c0_i32, %c0_i32_0 : i32, i32
  }
  func.func @transform_5(%arg0: i32) -> (i32, i32) {
    %c0_i32 = arith.constant 0 : i32
    %c0_i32_0 = arith.constant 0 : i32
    %c0_i32_1 = arith.constant 0 : i32
    return %c0_i32, %c0_i32_0 : i32, i32
  }
  func.func @transform_6(%arg0: i32) -> (i32, i32) {
    %c0_i32 = arith.constant 0 : i32
    %c0_i32_0 = arith.constant 0 : i32
    %c0_i32_1 = arith.constant 0 : i32
    return %c0_i32, %c0_i32_0 : i32, i32
  }
  func.func @transform_7(%arg0: i32) -> (i32, i32) {
    %c0_i32 = arith.constant 0 : i32
    %c0_i32_0 = arith.constant 0 : i32
    %c0_i32_1 = arith.constant 0 : i32
    return %c0_i32, %c0_i32_0 : i32, i32
  }
  func.func @transform_8(%arg0: i32) -> (i32, i32) {
    %c0_i32 = arith.constant 0 : i32
    %c0_i32_0 = arith.constant 0 : i32
    %c0_i32_1 = arith.constant 0 : i32
    return %c0_i32, %c0_i32_0 : i32, i32
  }
  func.func @transform_9(%arg0: i32) -> (i32, i32) {
    %c0_i32 = arith.constant 0 : i32
    %c0_i32_0 = arith.constant 0 : i32
    %c0_i32_1 = arith.constant 0 : i32
    return %c0_i32, %c0_i32_0 : i32, i32
  }
  func.func @transform_10(%arg0: i32) -> (i32, i32) {
    %c0_i32 = arith.constant 0 : i32
    %c0_i32_0 = arith.constant 0 : i32
    %c0_i32_1 = arith.constant 0 : i32
    return %c0_i32, %c0_i32_0 : i32, i32
  }
  func.func @transform_11(%arg0: i32) -> (i32, i32, i32) {
    %c0_i32 = arith.constant 0 : i32
    %c0_i32_0 = arith.constant 0 : i32
    %c0_i32_1 = arith.constant 0 : i32
    return %arg0, %c0_i32, %c0_i32_0 : i32, i32, i32
  }
}

</mosaic_0001>

<llo_original>
// kernel: net_forward.1
$region0: #{net_forward.1}
  #allocation0 [shape = 'u32[]', space=smem, size = 0x4, offset = 0x4, fixed_abs, tag = 'smem constant byte address 0x4 - core index']
  #allocation1 [shape = 'u32[144,128]{1,0:T(1,128)}', space=vmem, size = 0x12000, scoped, tag = 'internal scratch']
  %s0 = inlined_call_operand.vmem [shape: f32[2,4,14,28], index: 0, kind: input, shape index: {}]
  %s1 = inlined_call_operand.vmem [shape: f32[140,144], index: 1, kind: input, shape index: {}]
  %s2 = inlined_call_operand.vmem [shape: f32[1,138], index: 2, kind: input, shape index: {}]
  %s3 = inlined_call_operand.vmem [shape: f32[690,128], index: 3, kind: input, shape index: {}]
  %s4 = inlined_call_operand.vmem [shape: f32[1,112], index: 4, kind: input, shape index: {}]
  %s5 = inlined_call_operand.vmem [shape: f32[1232,120], index: 5, kind: input, shape index: {}]
  %s6 = inlined_call_operand.vmem [shape: f32[1,120], index: 6, kind: input, shape index: {}]
  %s7 = inlined_call_operand.vmem [shape: f32[120,84], index: 7, kind: input, shape index: {}]
  %s8 = inlined_call_operand.vmem [shape: f32[1,84], index: 8, kind: input, shape index: {}]
  %s9 = inlined_call_operand.vmem [shape: f32[84,19], index: 9, kind: input, shape index: {}]
  %s10 = inlined_call_operand.vmem [shape: f32[1,19], index: 10, kind: input, shape index: {}]
  %s11 = inlined_call_operand.hbm [shape: f32[2,1,19], index: 11, kind: output, shape index: {}]
  %s12 = sld [smem:[#allocation0]]
  $region77: #{net_forward.1} parent=0
    _
  %s14 = ssub.s32 1, %s12
  %s15 = scalar_select 0, %s14, %s12
  $region1: #{net_forward.1} parent=0
    #allocation2 [shape = 'u8[1024]{0}', space=vmem, size = 0x400, scoped, tag = 'output window, operand 0']
    #allocation3 [shape = 's32[2]{0}', space=sflag, size = 0x8, scoped, tag = 'scoped memory for net_forward.1']
    %16 = vsyncpa [#allocation3], 0
    %s17 = scalar_lea.sflag [#allocation3], 1
    %18 = vsyncpa %s17, 0
    loop: start=0, step=1, limit=4
    $region2: #{net_forward.1} parent=1 // loop_pre_header
      _
    $region3: #{net_forward.1} parent=1 // loop_header
      %s20 = sphi 0, %s24
      %p21 = scmp.ge.s32.totalorder %s20, 4
      %s30 = sphi 0, %s32
      %s33 = sphi 0, %s30
      %s34 = sphi 0, %s33
      %s50 = sphi 0, %s34
      %s54 = sphi 0, %s54
      %s56 = sphi 0, %s54
      %s57 = sphi 0, %s56
      %s71 = sphi 0, %s57
      %s75 = sphi 0, %s75
      %s77 = sphi 0, %s75
      %s78 = sphi 0, %s77
      %s92 = sphi 0, %s78
      %s96 = sphi 0, %s96
      %s98 = sphi 0, %s96
      %s99 = sphi 0, %s98
      %s113 = sphi 0, %s99
      %s117 = sphi 0, %s117
      %s119 = sphi 0, %s117
      %s120 = sphi 0, %s119
      %s134 = sphi 0, %s120
      %s138 = sphi 0, %s138
      %s140 = sphi 0, %s138
      %s141 = sphi 0, %s140
      %s155 = sphi 0, %s141
      %s159 = sphi 0, %s159
      %s161 = sphi 0, %s159
      %s162 = sphi 0, %s161
      %s176 = sphi 0, %s162
      %s180 = sphi 0, %s180
      %s182 = sphi 0, %s180
      %s183 = sphi 0, %s182
      %s197 = sphi 0, %s183
      %s201 = sphi 0, %s201
      %s203 = sphi 0, %s201
      %s204 = sphi 0, %s203
      %s218 = sphi 0, %s204
      %s222 = sphi 0, %s222
      %s224 = sphi 0, %s222
      %s225 = sphi 0, %s224
      %s239 = sphi 0, %s225
      %s243 = sphi 0, %s243
      %s245 = sphi 0, %s243
      %s246 = sphi 0, %s245
      %s260 = sphi 0, %s246
      %s266 = sphi 0, %s268
      %s269 = sphi 0, %s266
      %s270 = sphi 0, %s269
      %s286 = sphi 0, %s270
    $region4: #{net_forward.1} parent=1 // loop_header_branch
      %23 = sbr.rel (%p21) target = $region8
    $region5: #{net_forward.1} parent=1 // loop_body
      %s25 = ssub.s32 %s20, 1
      %s26 = ssub.s32 %s20, 2
      %s27 = sadd.s32 %s20, 1
      %s28 = ssub.s32 %s20, %s27
      %p29 = scmp.eq.s32.totalorder %s28, 0
      %s31 = sadd.s32 %s30, 1
      %s32 = scalar_select %p29, %s30, %s31
      %p35 = pneg %p29
      %p36 = scmp.eq.s32.totalorder %s20, 1
      %p37 = por %p35, %p36
      %p38 = scmp.ne.s32.totalorder %s30, %s33
      %p39 = scmp.eq.s32.totalorder %s20, 0
      %p40 = por %p38, %p39
      %p41 = scmp.ne.s32.totalorder %s30, %s33
      %p42 = scmp.eq.s32.totalorder %s25, 1
      %p43 = por %p41, %p42
      %p44 = scmp.ne.s32.totalorder %s33, %s34
      %p45 = scmp.eq.s32.totalorder %s25, 0
      %p46 = por %p44, %p45
      %p47 = scmp.ne.s32.totalorder %s33, %s34
      %p48 = scmp.eq.s32.totalorder %s26, 1
      %p49 = por %p47, %p48
      %p51 = scmp.ne.s32.totalorder %s34, %s50
      %p52 = scmp.eq.s32.totalorder %s26, 0
      %p53 = por %p51, %p52
      %s55 = sadd.s32 %s54, 1
      %p58 = scmp.eq.s32.totalorder %s20, 1
      %p59 = scmp.ne.s32.totalorder %s54, %s56
      %p60 = scmp.eq.s32.totalorder %s20, 0
      %p61 = por %p59, %p60
      %p62 = scmp.ne.s32.totalorder %s54, %s56
      %p63 = scmp.eq.s32.totalorder %s25, 1
      %p64 = por %p62, %p63
      %p65 = scmp.ne.s32.totalorder %s56, %s57
      %p66 = scmp.eq.s32.totalorder %s25, 0
      %p67 = por %p65, %p66
      %p68 = scmp.ne.s32.totalorder %s56, %s57
      %p69 = scmp.eq.s32.totalorder %s26, 1
      %p70 = por %p68, %p69
      %p72 = scmp.ne.s32.totalorder %s57, %s71
      %p73 = scmp.eq.s32.totalorder %s26, 0
      %p74 = por %p72, %p73
      %s76 = sadd.s32 %s75, 1
      %p79 = scmp.eq.s32.totalorder %s20, 1
      %p80 = scmp.ne.s32.totalorder %s75, %s77
      %p81 = scmp.eq.s32.totalorder %s20, 0
      %p82 = por %p80, %p81
      %p83 = scmp.ne.s32.totalorder %s75, %s77
      %p84 = scmp.eq.s32.totalorder %s25, 1
      %p85 = por %p83, %p84
      %p86 = scmp.ne.s32.totalorder %s77, %s78
      %p87 = scmp.eq.s32.totalorder %s25, 0
      %p88 = por %p86, %p87
      %p89 = scmp.ne.s32.totalorder %s77, %s78
      %p90 = scmp.eq.s32.totalorder %s26, 1
      %p91 = por %p89, %p90
      %p93 = scmp.ne.s32.totalorder %s78, %s92
      %p94 = scmp.eq.s32.totalorder %s26, 0
      %p95 = por %p93, %p94
      %s97 = sadd.s32 %s96, 1
      %p100 = scmp.eq.s32.totalorder %s20, 1
      %p101 = scmp.ne.s32.totalorder %s96, %s98
      %p102 = scmp.eq.s32.totalorder %s20, 0
      %p103 = por %p101, %p102
      %p104 = scmp.ne.s32.totalorder %s96, %s98
      %p105 = scmp.eq.s32.totalorder %s25, 1
      %p106 = por %p104, %p105
      %p107 = scmp.ne.s32.totalorder %s98, %s99
      %p108 = scmp.eq.s32.totalorder %s25, 0
      %p109 = por %p107, %p108
      %p110 = scmp.ne.s32.totalorder %s98, %s99
      %p111 = scmp.eq.s32.totalorder %s26, 1
      %p112 = por %p110, %p111
      %p114 = scmp.ne.s32.totalorder %s99, %s113
      %p115 = scmp.eq.s32.totalorder %s26, 0
      %p116 = por %p114, %p115
      %s118 = sadd.s32 %s117, 1
      %p121 = scmp.eq.s32.totalorder %s20, 1
      %p122 = scmp.ne.s32.totalorder %s117, %s119
      %p123 = scmp.eq.s32.totalorder %s20, 0
      %p124 = por %p122, %p123
      %p125 = scmp.ne.s32.totalorder %s117, %s119
      %p126 = scmp.eq.s32.totalorder %s25, 1
      %p127 = por %p125, %p126
      %p128 = scmp.ne.s32.totalorder %s119, %s120
      %p129 = scmp.eq.s32.totalorder %s25, 0
      %p130 = por %p128, %p129
      %p131 = scmp.ne.s32.totalorder %s119, %s120
      %p132 = scmp.eq.s32.totalorder %s26, 1
      %p133 = por %p131, %p132
      %p135 = scmp.ne.s32.totalorder %s120, %s134
      %p136 = scmp.eq.s32.totalorder %s26, 0
      %p137 = por %p135, %p136
      %s139 = sadd.s32 %s138, 1
      %p142 = scmp.eq.s32.totalorder %s20, 1
      %p143 = scmp.ne.s32.totalorder %s138, %s140
      %p144 = scmp.eq.s32.totalorder %s20, 0
      %p145 = por %p143, %p144
      %p146 = scmp.ne.s32.totalorder %s138, %s140
      %p147 = scmp.eq.s32.totalorder %s25, 1
      %p148 = por %p146, %p147
      %p149 = scmp.ne.s32.totalorder %s140, %s141
      %p150 = scmp.eq.s32.totalorder %s25, 0
      %p151 = por %p149, %p150
      %p152 = scmp.ne.s32.totalorder %s140, %s141
      %p153 = scmp.eq.s32.totalorder %s26, 1
      %p154 = por %p152, %p153
      %p156 = scmp.ne.s32.totalorder %s141, %s155
      %p157 = scmp.eq.s32.totalorder %s26, 0
      %p158 = por %p156, %p157
      %s160 = sadd.s32 %s159, 1
      %p163 = scmp.eq.s32.totalorder %s20, 1
      %p164 = scmp.ne.s32.totalorder %s159, %s161
      %p165 = scmp.eq.s32.totalorder %s20, 0
      %p166 = por %p164, %p165
      %p167 = scmp.ne.s32.totalorder %s159, %s161
      %p168 = scmp.eq.s32.totalorder %s25, 1
      %p169 = por %p167, %p168
      %p170 = scmp.ne.s32.totalorder %s161, %s162
      %p171 = scmp.eq.s32.totalorder %s25, 0
      %p172 = por %p170, %p171
      %p173 = scmp.ne.s32.totalorder %s161, %s162
      %p174 = scmp.eq.s32.totalorder %s26, 1
      %p175 = por %p173, %p174
      %p177 = scmp.ne.s32.totalorder %s162, %s176
      %p178 = scmp.eq.s32.totalorder %s26, 0
      %p179 = por %p177, %p178
      %s181 = sadd.s32 %s180, 1
      %p184 = scmp.eq.s32.totalorder %s20, 1
      %p185 = scmp.ne.s32.totalorder %s180, %s182
      %p186 = scmp.eq.s32.totalorder %s20, 0
      %p187 = por %p185, %p186
      %p188 = scmp.ne.s32.totalorder %s180, %s182
      %p189 = scmp.eq.s32.totalorder %s25, 1
      %p190 = por %p188, %p189
      %p191 = scmp.ne.s32.totalorder %s182, %s183
      %p192 = scmp.eq.s32.totalorder %s25, 0
      %p193 = por %p191, %p192
      %p194 = scmp.ne.s32.totalorder %s182, %s183
      %p195 = scmp.eq.s32.totalorder %s26, 1
      %p196 = por %p194, %p195
      %p198 = scmp.ne.s32.totalorder %s183, %s197
      %p199 = scmp.eq.s32.totalorder %s26, 0
      %p200 = por %p198, %p199
      %s202 = sadd.s32 %s201, 1
      %p205 = scmp.eq.s32.totalorder %s20, 1
      %p206 = scmp.ne.s32.totalorder %s201, %s203
      %p207 = scmp.eq.s32.totalorder %s20, 0
      %p208 = por %p206, %p207
      %p209 = scmp.ne.s32.totalorder %s201, %s203
      %p210 = scmp.eq.s32.totalorder %s25, 1
      %p211 = por %p209, %p210
      %p212 = scmp.ne.s32.totalorder %s203, %s204
      %p213 = scmp.eq.s32.totalorder %s25, 0
      %p214 = por %p212, %p213
      %p215 = scmp.ne.s32.totalorder %s203, %s204
      %p216 = scmp.eq.s32.totalorder %s26, 1
      %p217 = por %p215, %p216
      %p219 = scmp.ne.s32.totalorder %s204, %s218
      %p220 = scmp.eq.s32.totalorder %s26, 0
      %p221 = por %p219, %p220
      %s223 = sadd.s32 %s222, 1
      %p226 = scmp.eq.s32.totalorder %s20, 1
      %p227 = scmp.ne.s32.totalorder %s222, %s224
      %p228 = scmp.eq.s32.totalorder %s20, 0
      %p229 = por %p227, %p228
      %p230 = scmp.ne.s32.totalorder %s222, %s224
      %p231 = scmp.eq.s32.totalorder %s25, 1
      %p232 = por %p230, %p231
      %p233 = scmp.ne.s32.totalorder %s224, %s225
      %p234 = scmp.eq.s32.totalorder %s25, 0
      %p235 = por %p233, %p234
      %p236 = scmp.ne.s32.totalorder %s224, %s225
      %p237 = scmp.eq.s32.totalorder %s26, 1
      %p238 = por %p236, %p237
      %p240 = scmp.ne.s32.totalorder %s225, %s239
      %p241 = scmp.eq.s32.totalorder %s26, 0
      %p242 = por %p240, %p241
      %s244 = sadd.s32 %s243, 1
      %p247 = scmp.eq.s32.totalorder %s20, 1
      %p248 = scmp.ne.s32.totalorder %s243, %s245
      %p249 = scmp.eq.s32.totalorder %s20, 0
      %p250 = por %p248, %p249
      %p251 = scmp.ne.s32.totalorder %s243, %s245
      %p252 = scmp.eq.s32.totalorder %s25, 1
      %p253 = por %p251, %p252
      %p254 = scmp.ne.s32.totalorder %s245, %s246
      %p255 = scmp.eq.s32.totalorder %s25, 0
      %p256 = por %p254, %p255
      %p257 = scmp.ne.s32.totalorder %s245, %s246
      %p258 = scmp.eq.s32.totalorder %s26, 1
      %p259 = por %p257, %p258
      %p261 = scmp.ne.s32.totalorder %s246, %s260
      %p262 = scmp.eq.s32.totalorder %s26, 0
      %p263 = por %p261, %p262
      %s264 = ssub.s32 %s20, %s27
      %p265 = scmp.eq.s32.totalorder %s264, 0
      %s267 = sadd.s32 %s266, 1
      %s268 = scalar_select %p265, %s266, %s267
      %p271 = pneg %p265
      %p272 = scmp.eq.s32.totalorder %s20, 1
      %p273 = por %p271, %p272
      %p274 = scmp.ne.s32.totalorder %s266, %s269
      %p275 = scmp.eq.s32.totalorder %s20, 0
      %p276 = por %p274, %p275
      %p277 = scmp.ne.s32.totalorder %s266, %s269
      %p278 = scmp.eq.s32.totalorder %s25, 1
      %p279 = por %p277, %p278
      %p280 = scmp.ne.s32.totalorder %s269, %s270
      %p281 = scmp.eq.s32.totalorder %s25, 0
      %p282 = por %p280, %p281
      %p283 = scmp.ne.s32.totalorder %s269, %s270
      %p284 = scmp.eq.s32.totalorder %s26, 1
      %p285 = por %p283, %p284
      %p287 = scmp.ne.s32.totalorder %s270, %s286
      %p288 = scmp.eq.s32.totalorder %s26, 0
      %p289 = por %p287, %p288
      %p290 = scmp.le.s32.totalorder 1, %s20
      %p291 = scmp.lt.s32.totalorder %s20, 3
      %p292 = pnand %p290, %p291
      %p293 = pneg %p292
      // Predicated region
      $region9: #{net_forward.1} parent=5 // pred_check
        _
      $region10: #{net_forward.1} parent=5 // pred_check_branch
        %295 = sbr.rel (%p292) target = $region12
      $region11: #{net_forward.1} parent=5 // pred_region
        %s296 = ssub.s32 %s20, 1
        // Predicated region
        $region13: #{net_forward.1} parent=11 // pred_check
          %p297 = pneg %p67
        $region14: #{net_forward.1} parent=11 // pred_check_branch
          %299 = sbr.rel (%p297) target = $region16
        $region15: #{net_forward.1} parent=11 // pred_region
          _
        $region16: #{net_forward.1} parent=11 // pred_fallthru
          _
        // Predicated region
        $region17: #{net_forward.1} parent=11 // pred_check
          %p300 = pneg %p88
        $region18: #{net_forward.1} parent=11 // pred_check_branch
          %302 = sbr.rel (%p300) target = $region20
        $region19: #{net_forward.1} parent=11 // pred_region
          _
        $region20: #{net_forward.1} parent=11 // pred_fallthru
          _
        // Predicated region
        $region21: #{net_forward.1} parent=11 // pred_check
          %p303 = pneg %p109
        $region22: #{net_forward.1} parent=11 // pred_check_branch
          %305 = sbr.rel (%p303) target = $region24
        $region23: #{net_forward.1} parent=11 // pred_region
          _
        $region24: #{net_forward.1} parent=11 // pred_fallthru
          _
        // Predicated region
        $region25: #{net_forward.1} parent=11 // pred_check
          %p306 = pneg %p130
        $region26: #{net_forward.1} parent=11 // pred_check_branch
          %308 = sbr.rel (%p306) target = $region28
        $region27: #{net_forward.1} parent=11 // pred_region
          _
        $region28: #{net_forward.1} parent=11 // pred_fallthru
          _
        // Predicated region
        $region29: #{net_forward.1} parent=11 // pred_check
          %p309 = pneg %p151
        $region30: #{net_forward.1} parent=11 // pred_check_branch
          %311 = sbr.rel (%p309) target = $region32
        $region31: #{net_forward.1} parent=11 // pred_region
          _
        $region32: #{net_forward.1} parent=11 // pred_fallthru
          _
        // Predicated region
        $region33: #{net_forward.1} parent=11 // pred_check
          %p312 = pneg %p172
        $region34: #{net_forward.1} parent=11 // pred_check_branch
          %314 = sbr.rel (%p312) target = $region36
        $region35: #{net_forward.1} parent=11 // pred_region
          _
        $region36: #{net_forward.1} parent=11 // pred_fallthru
          _
        // Predicated region
        $region37: #{net_forward.1} parent=11 // pred_check
          %p315 = pneg %p193
        $region38: #{net_forward.1} parent=11 // pred_check_branch
          %317 = sbr.rel (%p315) target = $region40
        $region39: #{net_forward.1} parent=11 // pred_region
          _
        $region40: #{net_forward.1} parent=11 // pred_fallthru
          _
        // Predicated region
        $region41: #{net_forward.1} parent=11 // pred_check
          %p318 = pneg %p214
        $region42: #{net_forward.1} parent=11 // pred_check_branch
          %320 = sbr.rel (%p318) target = $region44
        $region43: #{net_forward.1} parent=11 // pred_region
          _
        $region44: #{net_forward.1} parent=11 // pred_fallthru
          _
        // Predicated region
        $region45: #{net_forward.1} parent=11 // pred_check
          %p321 = pneg %p235
        $region46: #{net_forward.1} parent=11 // pred_check_branch
          %323 = sbr.rel (%p321) target = $region48
        $region47: #{net_forward.1} parent=11 // pred_region
          _
        $region48: #{net_forward.1} parent=11 // pred_fallthru
          _
        // Predicated region
        $region49: #{net_forward.1} parent=11 // pred_check
          %p324 = pneg %p256
        $region50: #{net_forward.1} parent=11 // pred_check_branch
          %326 = sbr.rel (%p324) target = $region52
        $region51: #{net_forward.1} parent=11 // pred_region
          _
        $region52: #{net_forward.1} parent=11 // pred_fallthru
          _
      $region12: #{net_forward.1} parent=5 // pred_fallthru
        _
      %p327 = scmp.lt.s32.totalorder %s20, 2
      // Predicated region
      $region53: #{net_forward.1} parent=5 // pred_check
        %p328 = pneg %p327
      $region54: #{net_forward.1} parent=5 // pred_check_branch
        %330 = sbr.rel (%p328) target = $region56
      $region55: #{net_forward.1} parent=5 // pred_region
        // Predicated region
        $region57: #{net_forward.1} parent=55 // pred_check
          %p331 = pneg %p40
        $region58: #{net_forward.1} parent=55 // pred_check_branch
          %333 = sbr.rel (%p331) target = $region60
        $region59: #{net_forward.1} parent=55 // pred_region
          %p334 = scmp.lt.s32.totalorder %s20, 1
          %s335 = scalar_select %p334, %s20, 1
          %s336 = smul.addr %s335, 8
          %s337 = smul.addr %s336, 8
          %s338 = scalar_lea.vmem %s0, %s337
        $region60: #{net_forward.1} parent=55 // pred_fallthru
          _
      $region56: #{net_forward.1} parent=5 // pred_fallthru
        _
      %p339 = scmp.le.s32.totalorder 1, %s20
      %p340 = scmp.lt.s32.totalorder %s20, 3
      %p341 = pnand %p339, %p340
      %p342 = pneg %p341
      // Predicated region
      $region61: #{net_forward.1} parent=5 // pred_check
        _
      $region62: #{net_forward.1} parent=5 // pred_check_branch
        %344 = sbr.rel (%p341) target = $region64
      $region63: #{net_forward.1} parent=5 // pred_region
        %s345 = ssub.s32 %s20, 1
        %p346 = scmp.lt.s32.totalorder %s25, 1
        %s347 = scalar_select %p346, %s25, 1
        %s348 = smul.addr %s347, 8
        %s349 = smul.addr %s348, 8
        %s350 = scalar_lea.vmem %s0, %s349
        %p351 = pneg %p46
        %p352 = pneg %p43
        %p353 = pneg %p67
        %p354 = pneg %p64
        %p355 = pneg %p88
        %p356 = pneg %p85
        %p357 = pneg %p109
        %p358 = pneg %p106
        %p359 = pneg %p130
        %p360 = pneg %p127
        %p361 = pneg %p151
        %p362 = pneg %p148
        %p363 = pneg %p172
        %p364 = pneg %p169
        %p365 = pneg %p193
        %p366 = pneg %p190
        %p367 = pneg %p214
        %p368 = pneg %p211
        %p369 = pneg %p235
        %p370 = pneg %p232
        %p371 = pneg %p256
        %p372 = pneg %p253
        %p373 = pneg %p282
        %p374 = pneg %p279
        %s375 = sand.u32 %s269, 1
        %s376 = scalar_lea.sflag [#allocation3], %s375
        %s377 = sand.u32 %s269, 1
        %s378 = scalar_lea.vmem [#allocation2], %s377
        %p379 = scmp.lt.s32.totalorder %s25, 1
        %s380 = scalar_select %p379, %s25, 1
        %s381 = smul.addr %s380, 8
        %s382 = smul.addr %s381, 8
        %s383 = scalar_lea.vmem %s0, %s382
        %v384 = vld [vmem:[%s1] sm:$0xff]
        %v385 = vld [vmem:[%s1 + $0x8] sm:$0xff]
        %v386 = vld [vmem:[%s1 + $0x10] sm:$0xff]
        %v387 = vld [vmem:[%s1 + $0x18] sm:$0xff]
        %v388 = vld [vmem:[%s1 + $0x20] sm:$0xff]
        %v389 = vld [vmem:[%s1 + $0x28] sm:$0xff]
        %v390 = vld [vmem:[%s1 + $0x30] sm:$0xff]
        %v391 = vld [vmem:[%s1 + $0x38] sm:$0xff]
        %v392 = vld [vmem:[%s1 + $0x40] sm:$0xff]
        %v393 = vld [vmem:[%s1 + $0x48] sm:$0xff]
        %v394 = vld [vmem:[%s1 + $0x50] sm:$0xff]
        %v395 = vld [vmem:[%s1 + $0x58] sm:$0xff]
        %v396 = vld [vmem:[%s1 + $0x60] sm:$0xff]
        %v397 = vld [vmem:[%s1 + $0x68] sm:$0xff]
        %v398 = vld [vmem:[%s1 + $0x70] sm:$0xff]
        %v399 = vld [vmem:[%s1 + $0x78] sm:$0xff]
        %v400 = vld [vmem:[%s1 + $0x80] sm:$0xff]
        %v401 = vld [vmem:[%s1 + $0x88] sm:$0xff]
        %v402 = vld [vmem:[%s1 + $0x90] sm:$0xff]
        %v403 = vld [vmem:[%s1 + $0x98] sm:$0xff]
        %v404 = vld [vmem:[%s1 + $0xa0] sm:$0xff]
        %v405 = vld [vmem:[%s1 + $0xa8] sm:$0xff]
        %v406 = vld [vmem:[%s1 + $0xb0] sm:$0xff]
        %v407 = vld [vmem:[%s1 + $0xb8] sm:$0xff]
        %v408 = vld [vmem:[%s1 + $0xc0] sm:$0xff]
        %v409 = vld [vmem:[%s1 + $0xc8] sm:$0xff]
        %v410 = vld [vmem:[%s1 + $0xd0] sm:$0xff]
        %v411 = vld [vmem:[%s1 + $0xd8] sm:$0xff]
        %v412 = vld [vmem:[%s1 + $0xe0] sm:$0xff]
        %v413 = vld [vmem:[%s1 + $0xe8] sm:$0xff]
        %v414 = vld [vmem:[%s1 + $0xf0] sm:$0xff]
        %v415 = vld [vmem:[%s1 + $0xf8] sm:$0xff]
        %v416 = vld [vmem:[%s1 + $0x100] sm:$0xff]
        %v417 = vld [vmem:[%s1 + $0x108] sm:$0xff]
        %v418 = vld [vmem:[%s1 + $0x110] sm:$0xf]
        %v419 = vld [vmem:[%s1 + $0x118] sm:$0xf]
        %v420 = vld [vmem:[%s383] sm:$0xff]
        %v421 = vld [vmem:[%s383 + $0x8] sm:$0x1f]
        %s422 = scalar_lea.vmem %s383, 16
        %v423 = vld [vmem:[%s422] sm:$0xff]
        %v424 = vld [vmem:[%s422 + $0x8] sm:$0x1f]
        %s425 = scalar_lea.vmem %s383, 32
        %v426 = vld [vmem:[%s425] sm:$0xff]
        %v427 = vld [vmem:[%s425 + $0x8] sm:$0x1f]
        %s428 = scalar_lea.vmem %s383, 48
        %v429 = vld [vmem:[%s428] sm:$0xff]
        %v430 = vld [vmem:[%s428 + $0x8] sm:$0x1f]
        %v431 = vld [vmem:[%s383 + $0x1] sm:$0xff]
        %v432 = vld [vmem:[%s383 + $0x9] sm:$0x1f]
        %435 = vrot.lane.b32.xlu0 %v423, 28
        %v436 = vpop.permute.xlu0 %435
        %437 = vrot.lane.b32.xlu0 %v424, 28
        %v438 = vpop.permute.xlu0 %437
        %443 = vrot.lane.b32.xlu0 %v426, 56
        %v444 = vpop.permute.xlu0 %443
        %445 = vrot.lane.b32.xlu0 %v427, 56
        %v446 = vpop.permute.xlu0 %445
        %451 = vrot.lane.b32.xlu0 %v429, 84
        %v452 = vpop.permute.xlu0 %451
        %453 = vrot.lane.b32.xlu0 %v430, 84
        %v454 = vpop.permute.xlu0 %453
        %459 = vrot.lane.b32.xlu0 %v431, 112
        %v460 = vpop.permute.xlu0 %459
        %461 = vrot.lane.b32.xlu0 %v432, 112
        %v462 = vpop.permute.xlu0 %461
        %vm465 = vcmask 228352
        %v466 = vsel %vm465, %v420, %v436
        %v467 = vsel %vm465, %v421, %v438
        %vm468 = vcmask 457728
        %v469 = vsel %vm468, %v466, %v444
        %v470 = vsel %vm468, %v467, %v446
        %vm471 = vcmask 687104
        %v472 = vsel %vm471, %v469, %v452
        %v473 = vsel %vm471, %v470, %v454
        %vm474 = vcmask 916480
        %v475 = vsel %vm474, %v472, %v460
        %v476 = vsel %vm474, %v473, %v462
        %vm477 = vcmask 97280
        %v478 = vsel %vm477, %v460, 0
        %v480 = vsel %vm477, %v462, 0
        %vm482 = vcmask 1043456
        %v484 = vsel %vm482, %v418, 0
        %v487 = vsel %vm482, %v419, 0
        %489 = vmatprep.subr.mxu0 %v385
        %490 = vmatpush1.msra.mxu0 %v384
        %491 = vmatprep.subr.mxu0 %v387
        %492 = vmatpush1.msra.mxu0 %v386
        %493 = vmatprep.subr.mxu0 %v389
        %494 = vmatpush1.msra.mxu0 %v388
        %495 = vmatprep.subr.mxu0 %v391
        %496 = vmatpush1.msra.mxu0 %v390
        %497 = vmatprep.subr.mxu0 %v393
        %498 = vmatpush1.msra.mxu0 %v392
        %499 = vmatprep.subr.mxu0 %v395
        %500 = vmatpush1.msra.mxu0 %v394
        %501 = vmatprep.subr.mxu0 %v397
        %502 = vmatpush1.msra.mxu0 %v396
        %503 = vmatprep.subr.mxu0 %v399
        %504 = vmatpush1.msra.mxu0 %v398
        %505 = vmatprep.subr.mxu0 %v401
        %506 = vmatpush1.msra.mxu0 %v400
        %507 = vmatprep.subr.mxu0 %v403
        %508 = vmatpush1.msra.mxu0 %v402
        %509 = vmatprep.subr.mxu0 %v405
        %510 = vmatpush1.msra.mxu0 %v404
        %511 = vmatprep.subr.mxu0 %v407
        %512 = vmatpush1.msra.mxu0 %v406
        %513 = vmatprep.subr.mxu0 %v409
        %514 = vmatpush1.msra.mxu0 %v408
        %515 = vmatprep.subr.mxu0 %v411
        %516 = vmatpush1.msra.mxu0 %v410
        %517 = vmatprep.subr.mxu0 %v413
        %518 = vmatpush1.msra.mxu0 %v412
        %519 = vmatprep.subr.mxu0 %v415
        %520 = vmatpush1.msra.mxu0 %v414
        %521 = vmatprep.subr.mxu0 %v417
        %522 = vmatpush1.msra.mxu0 %v416
        %523 = vmatprep.subr.mxu0 %v487
        %524 = vmatpush1.msra.mxu0 %v484
        %525 = vmatprep.subr.mxu0 0.0
        %526 = vmatpush1.msra.mxu0 0.0
        %527 = vmatprep.subr.mxu0 0.0
        %528 = vmatpush1.msra.mxu0 0.0
        %529 = vmatprep.subr.mxu0 0.0
        %530 = vmatpush1.msra.mxu0 0.0
        %531 = vmatprep.subr.mxu0 0.0
        %532 = vmatpush1.msra.mxu0 0.0
        %533 = vmatprep.subr.mxu0 0.0
        %534 = vmatpush1.msra.mxu0 0.0
        %535 = vmatprep.subr.mxu0 0.0
        %536 = vmatpush1.msra.mxu0 0.0
        %537 = vmatprep.subr.mxu0 0.0
        %538 = vmatpush1.msra.mxu0 0.0
        %539 = vmatprep.subr.mxu0 0.0
        %540 = vmatpush1.msra.mxu0 0.0
        %541 = vmatprep.subr.mxu0 0.0
        %542 = vmatpush1.msra.mxu0 0.0
        %543 = vmatprep.subr.mxu0 0.0
        %544 = vmatpush1.msra.mxu0 0.0
        %545 = vmatprep.subr.mxu0 0.0
        %546 = vmatpush1.msra.mxu0 0.0
        %547 = vmatprep.subr.mxu0 0.0
        %548 = vmatpush1.msra.mxu0 0.0
        %549 = vmatprep.subr.mxu0 0.0
        %550 = vmatpush1.msra.mxu0 0.0
        %551 = vmatprep.subr.mxu0 0.0
        %552 = vmatpush1.msra.mxu0 0.0
        %553 = vmatprep.mubr.f32.mxu0 %v478
        %554 = vmatmul.mubr.f32.gmra.mrb[0].mxu0 %v475
        %v555 = vpop.f32.mrb[0].mxu0
        %v556 = vadd.f32 0.0, %v555
        %v557 = vpop.f32.mrb[0].mxu0
        %v558 = vadd.f32 0.0, %v557
        %559 = vmatprep.mubr.f32.mxu0 %v480
        %560 = vmatmul.mubr.f32.gmra.mrb[0].mxu0 %v476
        %v561 = vpop.f32.mrb[0].mxu0
        %v562 = vadd.f32 0.0, %v561
        %v563 = vpop.f32.mrb[0].mxu0
        %v564 = vadd.f32 0.0, %v563
        %565 = vdwg.mxu0
        %v566 = vld [vmem:[%s422 + $0x1] sm:$0xff]
        %v567 = vld [vmem:[%s422 + $0x9] sm:$0x1f]
        %568 = vrot.lane.b32.xlu0 %v426, 28
        %v569 = vpop.permute.xlu0 %568
        %570 = vrot.lane.b32.xlu0 %v427, 28
        %v571 = vpop.permute.xlu0 %570
        %574 = vrot.lane.b32.xlu0 %v429, 56
        %v575 = vpop.permute.xlu0 %574
        %576 = vrot.lane.b32.xlu0 %v430, 56
        %v577 = vpop.permute.xlu0 %576
        %580 = vrot.lane.b32.xlu0 %v431, 84
        %v581 = vpop.permute.xlu0 %580
        %582 = vrot.lane.b32.xlu0 %v432, 84
        %v583 = vpop.permute.xlu0 %582
        %588 = vrot.lane.b32.xlu0 %v566, 112
        %v589 = vpop.permute.xlu0 %588
        %590 = vrot.lane.b32.xlu0 %v567, 112
        %v591 = vpop.permute.xlu0 %590
        %v594 = vsel %vm465, %v423, %v569
        %v595 = vsel %vm465, %v424, %v571
        %v596 = vsel %vm468, %v594, %v575
        %v597 = vsel %vm468, %v595, %v577
        %v598 = vsel %vm471, %v596, %v581
        %v599 = vsel %vm471, %v597, %v583
        %v600 = vsel %vm474, %v598, %v589
        %v601 = vsel %vm474, %v599, %v591
        %v602 = vsel %vm477, %v589, 0
        %v604 = vsel %vm477, %v591, 0
        %606 = vmatprep.subr.mxu0 %v385
        %607 = vmatpush1.msra.mxu0 %v384
        %608 = vmatprep.subr.mxu0 %v387
        %609 = vmatpush1.msra.mxu0 %v386
        %610 = vmatprep.subr.mxu0 %v389
        %611 = vmatpush1.msra.mxu0 %v388
        %612 = vmatprep.subr.mxu0 %v391
        %613 = vmatpush1.msra.mxu0 %v390
        %614 = vmatprep.subr.mxu0 %v393
        %615 = vmatpush1.msra.mxu0 %v392
        %616 = vmatprep.subr.mxu0 %v395
        %617 = vmatpush1.msra.mxu0 %v394
        %618 = vmatprep.subr.mxu0 %v397
        %619 = vmatpush1.msra.mxu0 %v396
        %620 = vmatprep.subr.mxu0 %v399
        %621 = vmatpush1.msra.mxu0 %v398
        %622 = vmatprep.subr.mxu0 %v401
        %623 = vmatpush1.msra.mxu0 %v400
        %624 = vmatprep.subr.mxu0 %v403
        %625 = vmatpush1.msra.mxu0 %v402
        %626 = vmatprep.subr.mxu0 %v405
        %627 = vmatpush1.msra.mxu0 %v404
        %628 = vmatprep.subr.mxu0 %v407
        %629 = vmatpush1.msra.mxu0 %v406
        %630 = vmatprep.subr.mxu0 %v409
        %631 = vmatpush1.msra.mxu0 %v408
        %632 = vmatprep.subr.mxu0 %v411
        %633 = vmatpush1.msra.mxu0 %v410
        %634 = vmatprep.subr.mxu0 %v413
        %635 = vmatpush1.msra.mxu0 %v412
        %636 = vmatprep.subr.mxu0 %v415
        %637 = vmatpush1.msra.mxu0 %v414
        %638 = vmatprep.subr.mxu0 %v417
        %639 = vmatpush1.msra.mxu0 %v416
        %640 = vmatprep.subr.mxu0 %v487
        %641 = vmatpush1.msra.mxu0 %v484
        %642 = vmatprep.subr.mxu0 0.0
        %643 = vmatpush1.msra.mxu0 0.0
        %644 = vmatprep.subr.mxu0 0.0
        %645 = vmatpush1.msra.mxu0 0.0
        %646 = vmatprep.subr.mxu0 0.0
        %647 = vmatpush1.msra.mxu0 0.0
        %648 = vmatprep.subr.mxu0 0.0
        %649 = vmatpush1.msra.mxu0 0.0
        %650 = vmatprep.subr.mxu0 0.0
        %651 = vmatpush1.msra.mxu0 0.0
        %652 = vmatprep.subr.mxu0 0.0
        %653 = vmatpush1.msra.mxu0 0.0
        %654 = vmatprep.subr.mxu0 0.0
        %655 = vmatpush1.msra.mxu0 0.0
        %656 = vmatprep.subr.mxu0 0.0
        %657 = vmatpush1.msra.mxu0 0.0
        %658 = vmatprep.subr.mxu0 0.0
        %659 = vmatpush1.msra.mxu0 0.0
        %660 = vmatprep.subr.mxu0 0.0
        %661 = vmatpush1.msra.mxu0 0.0
        %662 = vmatprep.subr.mxu0 0.0
        %663 = vmatpush1.msra.mxu0 0.0
        %664 = vmatprep.subr.mxu0 0.0
        %665 = vmatpush1.msra.mxu0 0.0
        %666 = vmatprep.subr.mxu0 0.0
        %667 = vmatpush1.msra.mxu0 0.0
        %668 = vmatprep.subr.mxu0 0.0
        %669 = vmatpush1.msra.mxu0 0.0
        %670 = vmatprep.mubr.f32.mxu0 %v602
        %671 = vmatmul.mubr.f32.gmra.mrb[0].mxu0 %v600
        %v672 = vpop.f32.mrb[0].mxu0
        %v673 = vadd.f32 0.0, %v672
        %v674 = vpop.f32.mrb[0].mxu0
        %v675 = vadd.f32 0.0, %v674
        %676 = vmatprep.mubr.f32.mxu0 %v604
        %677 = vmatmul.mubr.f32.gmra.mrb[0].mxu0 %v601
        %v678 = vpop.f32.mrb[0].mxu0
        %v679 = vadd.f32 0.0, %v678
        %v680 = vpop.f32.mrb[0].mxu0
        %v681 = vadd.f32 0.0, %v680
        %682 = vdwg.mxu0
        %v683 = vld [vmem:[%s425 + $0x1] sm:$0xff]
        %v684 = vld [vmem:[%s425 + $0x9] sm:$0x1f]
        %685 = vrot.lane.b32.xlu0 %v429, 28
        %v686 = vpop.permute.xlu0 %685
        %687 = vrot.lane.b32.xlu0 %v430, 28
        %v688 = vpop.permute.xlu0 %687
        %691 = vrot.lane.b32.xlu0 %v431, 56
        %v692 = vpop.permute.xlu0 %691
        %693 = vrot.lane.b32.xlu0 %v432, 56
        %v694 = vpop.permute.xlu0 %693
        %697 = vrot.lane.b32.xlu0 %v566, 84
        %v698 = vpop.permute.xlu0 %697
        %699 = vrot.lane.b32.xlu0 %v567, 84
        %v700 = vpop.permute.xlu0 %699
        %705 = vrot.lane.b32.xlu0 %v683, 112
        %v706 = vpop.permute.xlu0 %705
        %707 = vrot.lane.b32.xlu0 %v684, 112
        %v708 = vpop.permute.xlu0 %707
        %v711 = vsel %vm465, %v426, %v686
        %v712 = vsel %vm465, %v427, %v688
        %v713 = vsel %vm468, %v711, %v692
        %v714 = vsel %vm468, %v712, %v694
        %v715 = vsel %vm471, %v713, %v698
        %v716 = vsel %vm471, %v714, %v700
        %v717 = vsel %vm474, %v715, %v706
        %v718 = vsel %vm474, %v716, %v708
        %v719 = vsel %vm477, %v706, 0
        %v721 = vsel %vm477, %v708, 0
        %723 = vmatprep.subr.mxu0 %v385
        %724 = vmatpush1.msra.mxu0 %v384
        %725 = vmatprep.subr.mxu0 %v387
        %726 = vmatpush1.msra.mxu0 %v386
        %727 = vmatprep.subr.mxu0 %v389
        %728 = vmatpush1.msra.mxu0 %v388
        %729 = vmatprep.subr.mxu0 %v391
        %730 = vmatpush1.msra.mxu0 %v390
        %731 = vmatprep.subr.mxu0 %v393
        %732 = vmatpush1.msra.mxu0 %v392
        %733 = vmatprep.subr.mxu0 %v395
        %734 = vmatpush1.msra.mxu0 %v394
        %735 = vmatprep.subr.mxu0 %v397
        %736 = vmatpush1.msra.mxu0 %v396
        %737 = vmatprep.subr.mxu0 %v399
        %738 = vmatpush1.msra.mxu0 %v398
        %739 = vmatprep.subr.mxu0 %v401
        %740 = vmatpush1.msra.mxu0 %v400
        %741 = vmatprep.subr.mxu0 %v403
        %742 = vmatpush1.msra.mxu0 %v402
        %743 = vmatprep.subr.mxu0 %v405
        %744 = vmatpush1.msra.mxu0 %v404
        %745 = vmatprep.subr.mxu0 %v407
        %746 = vmatpush1.msra.mxu0 %v406
        %747 = vmatprep.subr.mxu0 %v409
        %748 = vmatpush1.msra.mxu0 %v408
        %749 = vmatprep.subr.mxu0 %v411
        %750 = vmatpush1.msra.mxu0 %v410
        %751 = vmatprep.subr.mxu0 %v413
        %752 = vmatpush1.msra.mxu0 %v412
        %753 = vmatprep.subr.mxu0 %v415
        %754 = vmatpush1.msra.mxu0 %v414
        %755 = vmatprep.subr.mxu0 %v417
        %756 = vmatpush1.msra.mxu0 %v416
        %757 = vmatprep.subr.mxu0 %v487
        %758 = vmatpush1.msra.mxu0 %v484
        %759 = vmatprep.subr.mxu0 0.0
        %760 = vmatpush1.msra.mxu0 0.0
        %761 = vmatprep.subr.mxu0 0.0
        %762 = vmatpush1.msra.mxu0 0.0
        %763 = vmatprep.subr.mxu0 0.0
        %764 = vmatpush1.msra.mxu0 0.0
        %765 = vmatprep.subr.mxu0 0.0
        %766 = vmatpush1.msra.mxu0 0.0
        %767 = vmatprep.subr.mxu0 0.0
        %768 = vmatpush1.msra.mxu0 0.0
        %769 = vmatprep.subr.mxu0 0.0
        %770 = vmatpush1.msra.mxu0 0.0
        %771 = vmatprep.subr.mxu0 0.0
        %772 = vmatpush1.msra.mxu0 0.0
        %773 = vmatprep.subr.mxu0 0.0
        %774 = vmatpush1.msra.mxu0 0.0
        %775 = vmatprep.subr.mxu0 0.0
        %776 = vmatpush1.msra.mxu0 0.0
        %777 = vmatprep.subr.mxu0 0.0
        %778 = vmatpush1.msra.mxu0 0.0
        %779 = vmatprep.subr.mxu0 0.0
        %780 = vmatpush1.msra.mxu0 0.0
        %781 = vmatprep.subr.mxu0 0.0
        %782 = vmatpush1.msra.mxu0 0.0
        %783 = vmatprep.subr.mxu0 0.0
        %784 = vmatpush1.msra.mxu0 0.0
        %785 = vmatprep.subr.mxu0 0.0
        %786 = vmatpush1.msra.mxu0 0.0
        %787 = vmatprep.mubr.f32.mxu0 %v719
        %788 = vmatmul.mubr.f32.gmra.mrb[0].mxu0 %v717
        %v789 = vpop.f32.mrb[0].mxu0
        %v790 = vadd.f32 0.0, %v789
        %v791 = vpop.f32.mrb[0].mxu0
        %v792 = vadd.f32 0.0, %v791
        %793 = vmatprep.mubr.f32.mxu0 %v721
        %794 = vmatmul.mubr.f32.gmra.mrb[0].mxu0 %v718
        %v795 = vpop.f32.mrb[0].mxu0
        %v796 = vadd.f32 0.0, %v795
        %v797 = vpop.f32.mrb[0].mxu0
        %v798 = vadd.f32 0.0, %v797
        %799 = vdwg.mxu0
        %v800 = vld [vmem:[%s428 + $0x1] sm:$0xff]
        %v801 = vld [vmem:[%s428 + $0x9] sm:$0x1f]
        %802 = vrot.lane.b32.xlu0 %v431, 28
        %v803 = vpop.permute.xlu0 %802
        %804 = vrot.lane.b32.xlu0 %v432, 28
        %v805 = vpop.permute.xlu0 %804
        %808 = vrot.lane.b32.xlu0 %v566, 56
        %v809 = vpop.permute.xlu0 %808
        %810 = vrot.lane.b32.xlu0 %v567, 56
        %v811 = vpop.permute.xlu0 %810
        %814 = vrot.lane.b32.xlu0 %v683, 84
        %v815 = vpop.permute.xlu0 %814
        %816 = vrot.lane.b32.xlu0 %v684, 84
        %v817 = vpop.permute.xlu0 %816
        %822 = vrot.lane.b32.xlu0 %v800, 112
        %v823 = vpop.permute.xlu0 %822
        %824 = vrot.lane.b32.xlu0 %v801, 112
        %v825 = vpop.permute.xlu0 %824
        %v828 = vsel %vm465, %v429, %v803
        %v829 = vsel %vm465, %v430, %v805
        %v830 = vsel %vm468, %v828, %v809
        %v831 = vsel %vm468, %v829, %v811
        %v832 = vsel %vm471, %v830, %v815
        %v833 = vsel %vm471, %v831, %v817
        %v834 = vsel %vm474, %v832, %v823
        %v835 = vsel %vm474, %v833, %v825
        %v836 = vsel %vm477, %v823, 0
        %v838 = vsel %vm477, %v825, 0
        %840 = vmatprep.subr.mxu0 %v385
        %841 = vmatpush1.msra.mxu0 %v384
        %842 = vmatprep.subr.mxu0 %v387
        %843 = vmatpush1.msra.mxu0 %v386
        %844 = vmatprep.subr.mxu0 %v389
        %845 = vmatpush1.msra.mxu0 %v388
        %846 = vmatprep.subr.mxu0 %v391
        %847 = vmatpush1.msra.mxu0 %v390
        %848 = vmatprep.subr.mxu0 %v393
        %849 = vmatpush1.msra.mxu0 %v392
        %850 = vmatprep.subr.mxu0 %v395
        %851 = vmatpush1.msra.mxu0 %v394
        %852 = vmatprep.subr.mxu0 %v397
        %853 = vmatpush1.msra.mxu0 %v396
        %854 = vmatprep.subr.mxu0 %v399
        %855 = vmatpush1.msra.mxu0 %v398
        %856 = vmatprep.subr.mxu0 %v401
        %857 = vmatpush1.msra.mxu0 %v400
        %858 = vmatprep.subr.mxu0 %v403
        %859 = vmatpush1.msra.mxu0 %v402
        %860 = vmatprep.subr.mxu0 %v405
        %861 = vmatpush1.msra.mxu0 %v404
        %862 = vmatprep.subr.mxu0 %v407
        %863 = vmatpush1.msra.mxu0 %v406
        %864 = vmatprep.subr.mxu0 %v409
        %865 = vmatpush1.msra.mxu0 %v408
        %866 = vmatprep.subr.mxu0 %v411
        %867 = vmatpush1.msra.mxu0 %v410
        %868 = vmatprep.subr.mxu0 %v413
        %869 = vmatpush1.msra.mxu0 %v412
        %870 = vmatprep.subr.mxu0 %v415
        %871 = vmatpush1.msra.mxu0 %v414
        %872 = vmatprep.subr.mxu0 %v417
        %873 = vmatpush1.msra.mxu0 %v416
        %874 = vmatprep.subr.mxu0 %v487
        %875 = vmatpush1.msra.mxu0 %v484
        %876 = vmatprep.subr.mxu0 0.0
        %877 = vmatpush1.msra.mxu0 0.0
        %878 = vmatprep.subr.mxu0 0.0
        %879 = vmatpush1.msra.mxu0 0.0
        %880 = vmatprep.subr.mxu0 0.0
        %881 = vmatpush1.msra.mxu0 0.0
        %882 = vmatprep.subr.mxu0 0.0
        %883 = vmatpush1.msra.mxu0 0.0
        %884 = vmatprep.subr.mxu0 0.0
        %885 = vmatpush1.msra.mxu0 0.0
        %886 = vmatprep.subr.mxu0 0.0
        %887 = vmatpush1.msra.mxu0 0.0
        %888 = vmatprep.subr.mxu0 0.0
        %889 = vmatpush1.msra.mxu0 0.0
        %890 = vmatprep.subr.mxu0 0.0
        %891 = vmatpush1.msra.mxu0 0.0
        %892 = vmatprep.subr.mxu0 0.0
        %893 = vmatpush1.msra.mxu0 0.0
        %894 = vmatprep.subr.mxu0 0.0
        %895 = vmatpush1.msra.mxu0 0.0
        %896 = vmatprep.subr.mxu0 0.0
        %897 = vmatpush1.msra.mxu0 0.0
        %898 = vmatprep.subr.mxu0 0.0
        %899 = vmatpush1.msra.mxu0 0.0
        %900 = vmatprep.subr.mxu0 0.0
        %901 = vmatpush1.msra.mxu0 0.0
        %902 = vmatprep.subr.mxu0 0.0
        %903 = vmatpush1.msra.mxu0 0.0
        %904 = vmatprep.mubr.f32.mxu0 %v836
        %905 = vmatmul.mubr.f32.gmra.mrb[0].mxu0 %v834
        %v906 = vpop.f32.mrb[0].mxu0
        %v907 = vadd.f32 0.0, %v906
        %v908 = vpop.f32.mrb[0].mxu0
        %v909 = vadd.f32 0.0, %v908
        %910 = vmatprep.mubr.f32.mxu0 %v838
        %911 = vmatmul.mubr.f32.gmra.mrb[0].mxu0 %v835
        %v912 = vpop.f32.mrb[0].mxu0
        %v913 = vadd.f32 0.0, %v912
        %v914 = vpop.f32.mrb[0].mxu0
        %v915 = vadd.f32 0.0, %v914
        %916 = vdwg.mxu0
        %v917 = vmax.f32 %v556, %v673
        %v918 = vmax.f32 %v558, %v675
        %v919 = vmax.f32 %v562, %v679
        %v920 = vmax.f32 %v564, %v681
        %v921 = vmax.f32 %v790, %v907
        %v922 = vmax.f32 %v792, %v909
        %v923 = vmax.f32 %v796, %v913
        %v924 = vmax.f32 %v798, %v915
        %v925 = vld [vmem:[%s2] sm:$0x3]
        %930 = vrot.lane.b32.xlu0 %v917, 122
        %v931 = vpop.permute.xlu0 %930
        %932 = vrot.lane.b32.xlu0 %v918, 122
        %v933 = vpop.permute.xlu0 %932
        %934 = vrot.lane.b32.xlu0 %v919, 122
        %v935 = vpop.permute.xlu0 %934
        %936 = vrot.lane.b32.xlu0 %v920, 122
        %v937 = vpop.permute.xlu0 %936
        %vm938 = vcmask 998400
        %v939 = vsel %vm938, %v931, %v933
        %v940 = vsel %vm938, %v935, %v937
        %v945 = vmax.f32 %v917, %v939
        %v946 = vmax.f32 %v918, %v933
        %v947 = vmax.f32 %v919, %v940
        %v948 = vmax.f32 %v920, %v937
        %v950 = vlaneseq
        %v951 = vshrl.u32 %v950, 7
        %v952 = vsub.s32 0, %v951
        %v953 = vrot.slane %v925, %v952
        %v954 = vlaneseq
        %v955 = vshrl.u32 %v954, 7
        %v956 = vsub.s32 1, %v955
        %v957 = vrot.slane %v925, %v956
        %v960 = vadd.f32 %v945, %v953
        %v961 = vadd.f32 %v946, %v957
        %v962 = vadd.f32 %v947, %v953
        %v963 = vadd.f32 %v948, %v957
        %v964 = vmax.f32 %v960, 0.0
        %v965 = vmax.f32 %v961, 0.0
        %v966 = vmax.f32 %v962, 0.0
        %v967 = vmax.f32 %v963, 0.0
        %972 = vrot.lane.b32.xlu0 %v921, 122
        %v973 = vpop.permute.xlu0 %972
        %974 = vrot.lane.b32.xlu0 %v922, 122
        %v975 = vpop.permute.xlu0 %974
        %976 = vrot.lane.b32.xlu0 %v923, 122
        %v977 = vpop.permute.xlu0 %976
        %978 = vrot.lane.b32.xlu0 %v924, 122
        %v979 = vpop.permute.xlu0 %978
        %v980 = vsel %vm938, %v973, %v975
        %v981 = vsel %vm938, %v977, %v979
        %v986 = vmax.f32 %v921, %v980
        %v987 = vmax.f32 %v922, %v975
        %v988 = vmax.f32 %v923, %v981
        %v989 = vmax.f32 %v924, %v979
        %v990 = vadd.f32 %v986, %v953
        %v991 = vadd.f32 %v987, %v957
        %v992 = vadd.f32 %v988, %v953
        %v993 = vadd.f32 %v989, %v957
        %v994 = vmax.f32 %v990, 0.0
        %v995 = vmax.f32 %v991, 0.0
        %v996 = vmax.f32 %v992, 0.0
        %v997 = vmax.f32 %v993, 0.0
        %v998 = vld [vmem:[%s3] sm:$0xff]
        %v999 = vld [vmem:[%s3 + $0x8] sm:$0xff]
        %v1000 = vld [vmem:[%s3 + $0x10] sm:$0xff]
        %v1001 = vld [vmem:[%s3 + $0x18] sm:$0xff]
        %v1002 = vld [vmem:[%s3 + $0x20] sm:$0xff]
        %v1003 = vld [vmem:[%s3 + $0x28] sm:$0xff]
        %v1004 = vld [vmem:[%s3 + $0x30] sm:$0xff]
        %v1005 = vld [vmem:[%s3 + $0x38] sm:$0xff]
        %v1006 = vld [vmem:[%s3 + $0x40] sm:$0xff]
        %v1007 = vld [vmem:[%s3 + $0x48] sm:$0xff]
        %v1008 = vld [vmem:[%s3 + $0x50] sm:$0xff]
        %v1009 = vld [vmem:[%s3 + $0x58] sm:$0xff]
        %v1010 = vld [vmem:[%s3 + $0x60] sm:$0xff]
        %v1011 = vld [vmem:[%s3 + $0x68] sm:$0xff]
        %v1012 = vld [vmem:[%s3 + $0x70] sm:$0xff]
        %v1013 = vld [vmem:[%s3 + $0x78] sm:$0xff]
        %v1014 = vld [vmem:[%s3 + $0x80] sm:$0xff]
        %v1015 = vld [vmem:[%s3 + $0x88] sm:$0xff]
        %v1016 = vld [vmem:[%s3 + $0x90] sm:$0xff]
        %v1017 = vld [vmem:[%s3 + $0x98] sm:$0xff]
        %v1018 = vld [vmem:[%s3 + $0xa0] sm:$0xff]
        %v1019 = vld [vmem:[%s3 + $0xa8] sm:$0xff]
        %v1020 = vld [vmem:[%s3 + $0xb0] sm:$0xff]
        %v1021 = vld [vmem:[%s3 + $0xb8] sm:$0xff]
        %v1022 = vld [vmem:[%s3 + $0xc0] sm:$0xff]
        %v1023 = vld [vmem:[%s3 + $0xc8] sm:$0xff]
        %v1024 = vld [vmem:[%s3 + $0xd0] sm:$0xff]
        %v1025 = vld [vmem:[%s3 + $0xd8] sm:$0xff]
        %v1026 = vld [vmem:[%s3 + $0xe0] sm:$0xff]
        %v1027 = vld [vmem:[%s3 + $0xe8] sm:$0xff]
        %v1028 = vld [vmem:[%s3 + $0xf0] sm:$0xff]
        %v1029 = vld [vmem:[%s3 + $0xf8] sm:$0xff]
        %v1030 = vld [vmem:[%s3 + $0x100] sm:$0xff]
        %v1031 = vld [vmem:[%s3 + $0x108] sm:$0xff]
        %v1032 = vld [vmem:[%s3 + $0x110] sm:$0xff]
        %v1033 = vld [vmem:[%s3 + $0x118] sm:$0xff]
        %v1034 = vld [vmem:[%s3 + $0x120] sm:$0xff]
        %v1035 = vld [vmem:[%s3 + $0x128] sm:$0xff]
        %v1036 = vld [vmem:[%s3 + $0x130] sm:$0xff]
        %v1037 = vld [vmem:[%s3 + $0x138] sm:$0xff]
        %v1038 = vld [vmem:[%s3 + $0x140] sm:$0xff]
        %v1039 = vld [vmem:[%s3 + $0x148] sm:$0xff]
        %v1040 = vld [vmem:[%s3 + $0x150] sm:$0xff]
        %v1041 = vld [vmem:[%s3 + $0x158] sm:$0xff]
        %v1042 = vld [vmem:[%s3 + $0x160] sm:$0xff]
        %v1043 = vld [vmem:[%s3 + $0x168] sm:$0xff]
        %v1044 = vld [vmem:[%s3 + $0x170] sm:$0xff]
        %v1045 = vld [vmem:[%s3 + $0x178] sm:$0xff]
        %v1046 = vld [vmem:[%s3 + $0x180] sm:$0xff]
        %v1047 = vld [vmem:[%s3 + $0x188] sm:$0xff]
        %v1048 = vld [vmem:[%s3 + $0x190] sm:$0xff]
        %v1049 = vld [vmem:[%s3 + $0x198] sm:$0xff]
        %v1050 = vld [vmem:[%s3 + $0x1a0] sm:$0xff]
        %v1051 = vld [vmem:[%s3 + $0x1a8] sm:$0xff]
        %v1052 = vld [vmem:[%s3 + $0x1b0] sm:$0xff]
        %v1053 = vld [vmem:[%s3 + $0x1b8] sm:$0xff]
        %v1054 = vld [vmem:[%s3 + $0x1c0] sm:$0xff]
        %v1055 = vld [vmem:[%s3 + $0x1c8] sm:$0xff]
        %v1056 = vld [vmem:[%s3 + $0x1d0] sm:$0xff]
        %v1057 = vld [vmem:[%s3 + $0x1d8] sm:$0xff]
        %v1058 = vld [vmem:[%s3 + $0x1e0] sm:$0xff]
        %v1059 = vld [vmem:[%s3 + $0x1e8] sm:$0xff]
        %v1060 = vld [vmem:[%s3 + $0x1f0] sm:$0xff]
        %v1061 = vld [vmem:[%s3 + $0x1f8] sm:$0xff]
        %v1062 = vld [vmem:[%s3 + $0x200] sm:$0xff]
        %v1063 = vld [vmem:[%s3 + $0x208] sm:$0xff]
        %v1064 = vld [vmem:[%s3 + $0x210] sm:$0xff]
        %v1065 = vld [vmem:[%s3 + $0x218] sm:$0xff]
        %v1066 = vld [vmem:[%s3 + $0x220] sm:$0xff]
        %v1067 = vld [vmem:[%s3 + $0x228] sm:$0xff]
        %v1068 = vld [vmem:[%s3 + $0x230] sm:$0xff]
        %v1069 = vld [vmem:[%s3 + $0x238] sm:$0xff]
        %v1070 = vld [vmem:[%s3 + $0x240] sm:$0xff]
        %v1071 = vld [vmem:[%s3 + $0x248] sm:$0xff]
        %v1072 = vld [vmem:[%s3 + $0x250] sm:$0xff]
        %v1073 = vld [vmem:[%s3 + $0x258] sm:$0xff]
        %v1074 = vld [vmem:[%s3 + $0x260] sm:$0xff]
        %v1075 = vld [vmem:[%s3 + $0x268] sm:$0xff]
        %v1076 = vld [vmem:[%s3 + $0x270] sm:$0xff]
        %v1077 = vld [vmem:[%s3 + $0x278] sm:$0xff]
        %v1078 = vld [vmem:[%s3 + $0x280] sm:$0xff]
        %v1079 = vld [vmem:[%s3 + $0x288] sm:$0xff]
        %v1080 = vld [vmem:[%s3 + $0x290] sm:$0xff]
        %v1081 = vld [vmem:[%s3 + $0x298] sm:$0xff]
        %v1082 = vld [vmem:[%s3 + $0x2a0] sm:$0xff]
        %v1083 = vld [vmem:[%s3 + $0x2a8] sm:$0xff]
        %v1084 = vld [vmem:[%s3 + $0x2b0] sm:$0x3]
        %1089 = vrot.lane.b32.xlu0 %v994, 10
        %v1090 = vpop.permute.xlu0 %1089
        %1091 = vrot.lane.b32.xlu0 %v995, 10
        %v1092 = vpop.permute.xlu0 %1091
        %1093 = vrot.lane.b32.xlu0 %v996, 10
        %v1094 = vpop.permute.xlu0 %1093
        %1095 = vrot.lane.b32.xlu0 %v997, 10
        %v1096 = vpop.permute.xlu0 %1095
        %vm1097 = vcmask 80896
        %v1098 = vsel %vm1097, %v1090, %v1092
        %v1099 = vsel %vm1097, %v1094, %v1096
        %vm1108 = vcmask 1046528
        %v1109 = vrot.slane %v964, 1
        %v1110 = vrot.slane %v966, 1
        %v1111 = vsel %vm1108, %v1109, %v1110
        %v1112 = vrot.slane %v965, 1
        %v1113 = vrot.slane %v967, 1
        %v1114 = vsel %vm1108, %v1112, %v1113
        %1115 = vrot.lane.b32.xlu0 %v1111, 20
        %v1116 = vpop.permute.xlu0 %1115
        %1117 = vrot.lane.b32.xlu0 %v1114, 20
        %v1118 = vpop.permute.xlu0 %1117
        %1119 = vrot.lane.b32.xlu0 %v1110, 20
        %v1120 = vpop.permute.xlu0 %1119
        %1121 = vrot.lane.b32.xlu0 %v1113, 20
        %v1122 = vpop.permute.xlu0 %1121
        %vm1123 = vcmask 162816
        %v1124 = vsel %vm1123, %v1116, %v1118
        %v1125 = vsel %vm1123, %v1120, %v1122
        %v1130 = vrot.slane %v994, 1
        %v1131 = vrot.slane %v996, 1
        %v1132 = vsel %vm1108, %v1130, %v1131
        %v1133 = vrot.slane %v995, 1
        %v1134 = vrot.slane %v997, 1
        %v1135 = vsel %vm1108, %v1133, %v1134
        %1136 = vrot.lane.b32.xlu0 %v1132, 30
        %v1137 = vpop.permute.xlu0 %1136
        %1138 = vrot.lane.b32.xlu0 %v1135, 30
        %v1139 = vpop.permute.xlu0 %1138
        %1140 = vrot.lane.b32.xlu0 %v1131, 30
        %v1141 = vpop.permute.xlu0 %1140
        %1142 = vrot.lane.b32.xlu0 %v1134, 30
        %v1143 = vpop.permute.xlu0 %1142
        %vm1144 = vcmask 244736
        %v1145 = vsel %vm1144, %v1137, %v1139
        %v1146 = vsel %vm1144, %v1141, %v1143
        %vm1151 = vcmask 1045504
        %v1152 = vrot.slane %v964, 2
        %v1153 = vrot.slane %v966, 2
        %v1154 = vsel %vm1151, %v1152, %v1153
        %v1155 = vrot.slane %v965, 2
        %v1156 = vrot.slane %v967, 2
        %v1157 = vsel %vm1151, %v1155, %v1156
        %1158 = vrot.lane.b32.xlu0 %v1154, 40
        %v1159 = vpop.permute.xlu0 %1158
        %1160 = vrot.lane.b32.xlu0 %v1157, 40
        %v1161 = vpop.permute.xlu0 %1160
        %1162 = vrot.lane.b32.xlu0 %v1153, 40
        %v1163 = vpop.permute.xlu0 %1162
        %1164 = vrot.lane.b32.xlu0 %v1156, 40
        %v1165 = vpop.permute.xlu0 %1164
        %vm1166 = vcmask 326656
        %v1167 = vsel %vm1166, %v1159, %v1161
        %v1168 = vsel %vm1166, %v1163, %v1165
        %v1171 = vsel %vm1097, %v965, %v1090
        %v1172 = vsel %vm1097, %v967, %v1094
        %v1173 = vsel %vm1123, %v1098, %v1116
        %v1174 = vsel %vm1123, %v1099, %v1120
        %v1175 = vsel %vm1144, %v1124, %v1137
        %v1176 = vsel %vm1144, %v1125, %v1141
        %v1177 = vsel %vm1166, %v1145, %v1159
        %v1178 = vsel %vm1166, %v1146, %v1163
        %vm1179 = vcmask 408576
        %v1180 = vsel %vm1179, %v1167, 0
        %v1182 = vsel %vm1179, %v1168, 0
        %vm1184 = vcmask 1041408
        %v1186 = vsel %vm1184, %v1084, 0
        %1188 = vmatprep.subr.mxu0 0.0
        %1189 = vmatpush1.msra.mxu0 %v998
        %1190 = vmatprep.subr.mxu0 0.0
        %1191 = vmatpush1.msra.mxu0 %v999
        %1192 = vmatprep.subr.mxu0 0.0
        %1193 = vmatpush1.msra.mxu0 %v1000
        %1194 = vmatprep.subr.mxu0 0.0
        %1195 = vmatpush1.msra.mxu0 %v1001
        %1196 = vmatprep.subr.mxu0 0.0
        %1197 = vmatpush1.msra.mxu0 %v1002
        %1198 = vmatprep.subr.mxu0 0.0
        %1199 = vmatpush1.msra.mxu0 %v1003
        %1200 = vmatprep.subr.mxu0 0.0
        %1201 = vmatpush1.msra.mxu0 %v1004
        %1202 = vmatprep.subr.mxu0 0.0
        %1203 = vmatpush1.msra.mxu0 %v1005
        %1204 = vmatprep.subr.mxu0 0.0
        %1205 = vmatpush1.msra.mxu0 %v1006
        %1206 = vmatprep.subr.mxu0 0.0
        %1207 = vmatpush1.msra.mxu0 %v1007
        %1208 = vmatprep.subr.mxu0 0.0
        %1209 = vmatpush1.msra.mxu0 %v1008
        %1210 = vmatprep.subr.mxu0 0.0
        %1211 = vmatpush1.msra.mxu0 %v1009
        %1212 = vmatprep.subr.mxu0 0.0
        %1213 = vmatpush1.msra.mxu0 %v1010
        %1214 = vmatprep.subr.mxu0 0.0
        %1215 = vmatpush1.msra.mxu0 %v1011
        %1216 = vmatprep.subr.mxu0 0.0
        %1217 = vmatpush1.msra.mxu0 %v1012
        %1218 = vmatprep.subr.mxu0 0.0
        %1219 = vmatpush1.msra.mxu0 %v1013
        %1220 = vmatprep.subr.mxu0 0.0
        %1221 = vmatpush1.msra.mxu0 %v1014
        %1222 = vmatprep.subr.mxu0 0.0
        %1223 = vmatpush1.msra.mxu0 %v1015
        %1224 = vmatprep.subr.mxu0 0.0
        %1225 = vmatpush1.msra.mxu0 %v1016
        %1226 = vmatprep.subr.mxu0 0.0
        %1227 = vmatpush1.msra.mxu0 %v1017
        %1228 = vmatprep.subr.mxu0 0.0
        %1229 = vmatpush1.msra.mxu0 %v1018
        %1230 = vmatprep.subr.mxu0 0.0
        %1231 = vmatpush1.msra.mxu0 %v1019
        %1232 = vmatprep.subr.mxu0 0.0
        %1233 = vmatpush1.msra.mxu0 %v1020
        %1234 = vmatprep.subr.mxu0 0.0
        %1235 = vmatpush1.msra.mxu0 %v1021
        %1236 = vmatprep.subr.mxu0 0.0
        %1237 = vmatpush1.msra.mxu0 %v1022
        %1238 = vmatprep.subr.mxu0 0.0
        %1239 = vmatpush1.msra.mxu0 %v1023
        %1240 = vmatprep.subr.mxu0 0.0
        %1241 = vmatpush1.msra.mxu0 %v1024
        %1242 = vmatprep.subr.mxu0 0.0
        %1243 = vmatpush1.msra.mxu0 %v1025
        %1244 = vmatprep.subr.mxu0 0.0
        %1245 = vmatpush1.msra.mxu0 %v1026
        %1246 = vmatprep.subr.mxu0 0.0
        %1247 = vmatpush1.msra.mxu0 %v1027
        %1248 = vmatprep.subr.mxu0 0.0
        %1249 = vmatpush1.msra.mxu0 %v1028
        %1250 = vmatprep.subr.mxu0 0.0
        %1251 = vmatpush1.msra.mxu0 %v1029
        %1252 = vmatprep.mubr.f32.mxu0 %v1171
        %1253 = vmatmul.mubr.f32.gmra.mrb[0].mxu0 %v964
        %v1254 = vpop.f32.mrb[0].mxu0
        %v1255 = vadd.f32 0.0, %v1254
        %v1256 = vpop.f32.mrb[0].mxu0
        %1257 = vmatprep.mubr.f32.mxu0 %v1172
        %1258 = vmatmul.mubr.f32.gmra.mrb[0].mxu0 %v966
        %v1259 = vpop.f32.mrb[0].mxu0
        %v1260 = vadd.f32 0.0, %v1259
        %v1261 = vpop.f32.mrb[0].mxu0
        %1262 = vdwg.mxu0
        %1263 = vmatprep.subr.mxu0 0.0
        %1264 = vmatpush1.msra.mxu0 %v1030
        %1265 = vmatprep.subr.mxu0 0.0
        %1266 = vmatpush1.msra.mxu0 %v1031
        %1267 = vmatprep.subr.mxu0 0.0
        %1268 = vmatpush1.msra.mxu0 %v1032
        %1269 = vmatprep.subr.mxu0 0.0
        %1270 = vmatpush1.msra.mxu0 %v1033
        %1271 = vmatprep.subr.mxu0 0.0
        %1272 = vmatpush1.msra.mxu0 %v1034
        %1273 = vmatprep.subr.mxu0 0.0
        %1274 = vmatpush1.msra.mxu0 %v1035
        %1275 = vmatprep.subr.mxu0 0.0
        %1276 = vmatpush1.msra.mxu0 %v1036
        %1277 = vmatprep.subr.mxu0 0.0
        %1278 = vmatpush1.msra.mxu0 %v1037
        %1279 = vmatprep.subr.mxu0 0.0
        %1280 = vmatpush1.msra.mxu0 %v1038
        %1281 = vmatprep.subr.mxu0 0.0
        %1282 = vmatpush1.msra.mxu0 %v1039
        %1283 = vmatprep.subr.mxu0 0.0
        %1284 = vmatpush1.msra.mxu0 %v1040
        %1285 = vmatprep.subr.mxu0 0.0
        %1286 = vmatpush1.msra.mxu0 %v1041
        %1287 = vmatprep.subr.mxu0 0.0
        %1288 = vmatpush1.msra.mxu0 %v1042
        %1289 = vmatprep.subr.mxu0 0.0
        %1290 = vmatpush1.msra.mxu0 %v1043
        %1291 = vmatprep.subr.mxu0 0.0
        %1292 = vmatpush1.msra.mxu0 %v1044
        %1293 = vmatprep.subr.mxu0 0.0
        %1294 = vmatpush1.msra.mxu0 %v1045
        %1295 = vmatprep.subr.mxu0 0.0
        %1296 = vmatpush1.msra.mxu0 %v1046
        %1297 = vmatprep.subr.mxu0 0.0
        %1298 = vmatpush1.msra.mxu0 %v1047
        %1299 = vmatprep.subr.mxu0 0.0
        %1300 = vmatpush1.msra.mxu0 %v1048
        %1301 = vmatprep.subr.mxu0 0.0
        %1302 = vmatpush1.msra.mxu0 %v1049
        %1303 = vmatprep.subr.mxu0 0.0
        %1304 = vmatpush1.msra.mxu0 %v1050
        %1305 = vmatprep.subr.mxu0 0.0
        %1306 = vmatpush1.msra.mxu0 %v1051
        %1307 = vmatprep.subr.mxu0 0.0
        %1308 = vmatpush1.msra.mxu0 %v1052
        %1309 = vmatprep.subr.mxu0 0.0
        %1310 = vmatpush1.msra.mxu0 %v1053
        %1311 = vmatprep.subr.mxu0 0.0
        %1312 = vmatpush1.msra.mxu0 %v1054
        %1313 = vmatprep.subr.mxu0 0.0
        %1314 = vmatpush1.msra.mxu0 %v1055
        %1315 = vmatprep.subr.mxu0 0.0
        %1316 = vmatpush1.msra.mxu0 %v1056
        %1317 = vmatprep.subr.mxu0 0.0
        %1318 = vmatpush1.msra.mxu0 %v1057
        %1319 = vmatprep.subr.mxu0 0.0
        %1320 = vmatpush1.msra.mxu0 %v1058
        %1321 = vmatprep.subr.mxu0 0.0
        %1322 = vmatpush1.msra.mxu0 %v1059
        %1323 = vmatprep.subr.mxu0 0.0
        %1324 = vmatpush1.msra.mxu0 %v1060
        %1325 = vmatprep.subr.mxu0 0.0
        %1326 = vmatpush1.msra.mxu0 %v1061
        %1327 = vmatprep.mubr.f32.mxu0 %v1175
        %1328 = vmatmul.mubr.f32.gmra.mrb[0].mxu0 %v1173
        %v1329 = vpop.f32.mrb[0].mxu0
        %v1330 = vadd.f32 %v1255, %v1329
        %v1331 = vpop.f32.mrb[0].mxu0
        %1332 = vmatprep.mubr.f32.mxu0 %v1176
        %1333 = vmatmul.mubr.f32.gmra.mrb[0].mxu0 %v1174
        %v1334 = vpop.f32.mrb[0].mxu0
        %v1335 = vadd.f32 %v1260, %v1334
        %v1336 = vpop.f32.mrb[0].mxu0
        %1337 = vdwg.mxu0
        %1338 = vmatprep.subr.mxu0 0.0
        %1339 = vmatpush1.msra.mxu0 %v1062
        %1340 = vmatprep.subr.mxu0 0.0
        %1341 = vmatpush1.msra.mxu0 %v1063
        %1342 = vmatprep.subr.mxu0 0.0
        %1343 = vmatpush1.msra.mxu0 %v1064
        %1344 = vmatprep.subr.mxu0 0.0
        %1345 = vmatpush1.msra.mxu0 %v1065
        %1346 = vmatprep.subr.mxu0 0.0
        %1347 = vmatpush1.msra.mxu0 %v1066
        %1348 = vmatprep.subr.mxu0 0.0
        %1349 = vmatpush1.msra.mxu0 %v1067
        %1350 = vmatprep.subr.mxu0 0.0
        %1351 = vmatpush1.msra.mxu0 %v1068
        %1352 = vmatprep.subr.mxu0 0.0
        %1353 = vmatpush1.msra.mxu0 %v1069
        %1354 = vmatprep.subr.mxu0 0.0
        %1355 = vmatpush1.msra.mxu0 %v1070
        %1356 = vmatprep.subr.mxu0 0.0
        %1357 = vmatpush1.msra.mxu0 %v1071
        %1358 = vmatprep.subr.mxu0 0.0
        %1359 = vmatpush1.msra.mxu0 %v1072
        %1360 = vmatprep.subr.mxu0 0.0
        %1361 = vmatpush1.msra.mxu0 %v1073
        %1362 = vmatprep.subr.mxu0 0.0
        %1363 = vmatpush1.msra.mxu0 %v1074
        %1364 = vmatprep.subr.mxu0 0.0
        %1365 = vmatpush1.msra.mxu0 %v1075
        %1366 = vmatprep.subr.mxu0 0.0
        %1367 = vmatpush1.msra.mxu0 %v1076
        %1368 = vmatprep.subr.mxu0 0.0
        %1369 = vmatpush1.msra.mxu0 %v1077
        %1370 = vmatprep.subr.mxu0 0.0
        %1371 = vmatpush1.msra.mxu0 %v1078
        %1372 = vmatprep.subr.mxu0 0.0
        %1373 = vmatpush1.msra.mxu0 %v1079
        %1374 = vmatprep.subr.mxu0 0.0
        %1375 = vmatpush1.msra.mxu0 %v1080
        %1376 = vmatprep.subr.mxu0 0.0
        %1377 = vmatpush1.msra.mxu0 %v1081
        %1378 = vmatprep.subr.mxu0 0.0
        %1379 = vmatpush1.msra.mxu0 %v1082
        %1380 = vmatprep.subr.mxu0 0.0
        %1381 = vmatpush1.msra.mxu0 %v1083
        %1382 = vmatprep.subr.mxu0 0.0
        %1383 = vmatpush1.msra.mxu0 %v1186
        %1384 = vmatprep.subr.mxu0 0.0
        %1385 = vmatpush1.msra.mxu0 0.0
        %1386 = vmatprep.subr.mxu0 0.0
        %1387 = vmatpush1.msra.mxu0 0.0
        %1388 = vmatprep.subr.mxu0 0.0
        %1389 = vmatpush1.msra.mxu0 0.0
        %1390 = vmatprep.subr.mxu0 0.0
        %1391 = vmatpush1.msra.mxu0 0.0
        %1392 = vmatprep.subr.mxu0 0.0
        %1393 = vmatpush1.msra.mxu0 0.0
        %1394 = vmatprep.subr.mxu0 0.0
        %1395 = vmatpush1.msra.mxu0 0.0
        %1396 = vmatprep.subr.mxu0 0.0
        %1397 = vmatpush1.msra.mxu0 0.0
        %1398 = vmatprep.subr.mxu0 0.0
        %1399 = vmatpush1.msra.mxu0 0.0
        %1400 = vmatprep.subr.mxu0 0.0
        %1401 = vmatpush1.msra.mxu0 0.0
        %1402 = vmatprep.mubr.f32.mxu0 %v1180
        %1403 = vmatmul.mubr.f32.gmra.mrb[0].mxu0 %v1177
        %v1404 = vpop.f32.mrb[0].mxu0
        %v1405 = vadd.f32 %v1330, %v1404
        %v1406 = vpop.f32.mrb[0].mxu0
        %1407 = vmatprep.mubr.f32.mxu0 %v1182
        %1408 = vmatmul.mubr.f32.gmra.mrb[0].mxu0 %v1178
        %v1409 = vpop.f32.mrb[0].mxu0
        %v1410 = vadd.f32 %v1335, %v1409
        %v1411 = vpop.f32.mrb[0].mxu0
        %1412 = vdwg.mxu0
        %1413 = vrot.lane.b32.xlu0 %v1111, 10
        %v1414 = vpop.permute.xlu0 %1413
        %1415 = vrot.lane.b32.xlu0 %v1114, 10
        %v1416 = vpop.permute.xlu0 %1415
        %1417 = vrot.lane.b32.xlu0 %v1110, 10
        %v1418 = vpop.permute.xlu0 %1417
        %1419 = vrot.lane.b32.xlu0 %v1113, 10
        %v1420 = vpop.permute.xlu0 %1419
        %v1421 = vsel %vm1097, %v1414, %v1416
        %v1422 = vsel %vm1097, %v1418, %v1420
        %1427 = vrot.lane.b32.xlu0 %v1132, 20
        %v1428 = vpop.permute.xlu0 %1427
        %1429 = vrot.lane.b32.xlu0 %v1135, 20
        %v1430 = vpop.permute.xlu0 %1429
        %1431 = vrot.lane.b32.xlu0 %v1131, 20
        %v1432 = vpop.permute.xlu0 %1431
        %1433 = vrot.lane.b32.xlu0 %v1134, 20
        %v1434 = vpop.permute.xlu0 %1433
        %v1435 = vsel %vm1123, %v1428, %v1430
        %v1436 = vsel %vm1123, %v1432, %v1434
        %1441 = vrot.lane.b32.xlu0 %v1154, 30
        %v1442 = vpop.permute.xlu0 %1441
        %1443 = vrot.lane.b32.xlu0 %v1157, 30
        %v1444 = vpop.permute.xlu0 %1443
        %1445 = vrot.lane.b32.xlu0 %v1153, 30
        %v1446 = vpop.permute.xlu0 %1445
        %1447 = vrot.lane.b32.xlu0 %v1156, 30
        %v1448 = vpop.permute.xlu0 %1447
        %v1449 = vsel %vm1144, %v1442, %v1444
        %v1450 = vsel %vm1144, %v1446, %v1448
        %v1455 = vrot.slane %v994, 2
        %v1456 = vrot.slane %v996, 2
        %v1457 = vsel %vm1151, %v1455, %v1456
        %v1458 = vrot.slane %v995, 2
        %v1459 = vrot.slane %v997, 2
        %v1460 = vsel %vm1151, %v1458, %v1459
        %1461 = vrot.lane.b32.xlu0 %v1457, 40
        %v1462 = vpop.permute.xlu0 %1461
        %1463 = vrot.lane.b32.xlu0 %v1460, 40
        %v1464 = vpop.permute.xlu0 %1463
        %1465 = vrot.lane.b32.xlu0 %v1456, 40
        %v1466 = vpop.permute.xlu0 %1465
        %1467 = vrot.lane.b32.xlu0 %v1459, 40
        %v1468 = vpop.permute.xlu0 %1467
        %v1469 = vsel %vm1166, %v1462, %v1464
        %v1470 = vsel %vm1166, %v1466, %v1468
        %v1473 = vsel %vm1097, %v995, %v1414
        %v1474 = vsel %vm1097, %v997, %v1418
        %v1475 = vsel %vm1123, %v1421, %v1428
        %v1476 = vsel %vm1123, %v1422, %v1432
        %v1477 = vsel %vm1144, %v1435, %v1442
        %v1478 = vsel %vm1144, %v1436, %v1446
        %v1479 = vsel %vm1166, %v1449, %v1462
        %v1480 = vsel %vm1166, %v1450, %v1466
        %v1481 = vsel %vm1179, %v1469, 0
        %v1483 = vsel %vm1179, %v1470, 0
        %1485 = vmatprep.subr.mxu0 0.0
        %1486 = vmatpush1.msra.mxu0 %v998
        %1487 = vmatprep.subr.mxu0 0.0
        %1488 = vmatpush1.msra.mxu0 %v999
        %1489 = vmatprep.subr.mxu0 0.0
        %1490 = vmatpush1.msra.mxu0 %v1000
        %1491 = vmatprep.subr.mxu0 0.0
        %1492 = vmatpush1.msra.mxu0 %v1001
        %1493 = vmatprep.subr.mxu0 0.0
        %1494 = vmatpush1.msra.mxu0 %v1002
        %1495 = vmatprep.subr.mxu0 0.0
        %1496 = vmatpush1.msra.mxu0 %v1003
        %1497 = vmatprep.subr.mxu0 0.0
        %1498 = vmatpush1.msra.mxu0 %v1004
        %1499 = vmatprep.subr.mxu0 0.0
        %1500 = vmatpush1.msra.mxu0 %v1005
        %1501 = vmatprep.subr.mxu0 0.0
        %1502 = vmatpush1.msra.mxu0 %v1006
        %1503 = vmatprep.subr.mxu0 0.0
        %1504 = vmatpush1.msra.mxu0 %v1007
        %1505 = vmatprep.subr.mxu0 0.0
        %1506 = vmatpush1.msra.mxu0 %v1008
        %1507 = vmatprep.subr.mxu0 0.0
        %1508 = vmatpush1.msra.mxu0 %v1009
        %1509 = vmatprep.subr.mxu0 0.0
        %1510 = vmatpush1.msra.mxu0 %v1010
        %1511 = vmatprep.subr.mxu0 0.0
        %1512 = vmatpush1.msra.mxu0 %v1011
        %1513 = vmatprep.subr.mxu0 0.0
        %1514 = vmatpush1.msra.mxu0 %v1012
        %1515 = vmatprep.subr.mxu0 0.0
        %1516 = vmatpush1.msra.mxu0 %v1013
        %1517 = vmatprep.subr.mxu0 0.0
        %1518 = vmatpush1.msra.mxu0 %v1014
        %1519 = vmatprep.subr.mxu0 0.0
        %1520 = vmatpush1.msra.mxu0 %v1015
        %1521 = vmatprep.subr.mxu0 0.0
        %1522 = vmatpush1.msra.mxu0 %v1016
        %1523 = vmatprep.subr.mxu0 0.0
        %1524 = vmatpush1.msra.mxu0 %v1017
        %1525 = vmatprep.subr.mxu0 0.0
        %1526 = vmatpush1.msra.mxu0 %v1018
        %1527 = vmatprep.subr.mxu0 0.0
        %1528 = vmatpush1.msra.mxu0 %v1019
        %1529 = vmatprep.subr.mxu0 0.0
        %1530 = vmatpush1.msra.mxu0 %v1020
        %1531 = vmatprep.subr.mxu0 0.0
        %1532 = vmatpush1.msra.mxu0 %v1021
        %1533 = vmatprep.subr.mxu0 0.0
        %1534 = vmatpush1.msra.mxu0 %v1022
        %1535 = vmatprep.subr.mxu0 0.0
        %1536 = vmatpush1.msra.mxu0 %v1023
        %1537 = vmatprep.subr.mxu0 0.0
        %1538 = vmatpush1.msra.mxu0 %v1024
        %1539 = vmatprep.subr.mxu0 0.0
        %1540 = vmatpush1.msra.mxu0 %v1025
        %1541 = vmatprep.subr.mxu0 0.0
        %1542 = vmatpush1.msra.mxu0 %v1026
        %1543 = vmatprep.subr.mxu0 0.0
        %1544 = vmatpush1.msra.mxu0 %v1027
        %1545 = vmatprep.subr.mxu0 0.0
        %1546 = vmatpush1.msra.mxu0 %v1028
        %1547 = vmatprep.subr.mxu0 0.0
        %1548 = vmatpush1.msra.mxu0 %v1029
        %1549 = vmatprep.mubr.f32.mxu0 %v1473
        %1550 = vmatmul.mubr.f32.gmra.mrb[0].mxu0 %v994
        %v1551 = vpop.f32.mrb[0].mxu0
        %v1552 = vadd.f32 0.0, %v1551
        %v1553 = vpop.f32.mrb[0].mxu0
        %1554 = vmatprep.mubr.f32.mxu0 %v1474
        %1555 = vmatmul.mubr.f32.gmra.mrb[0].mxu0 %v996
        %v1556 = vpop.f32.mrb[0].mxu0
        %v1557 = vadd.f32 0.0, %v1556
        %v1558 = vpop.f32.mrb[0].mxu0
        %1559 = vdwg.mxu0
        %1560 = vmatprep.subr.mxu0 0.0
        %1561 = vmatpush1.msra.mxu0 %v1030
        %1562 = vmatprep.subr.mxu0 0.0
        %1563 = vmatpush1.msra.mxu0 %v1031
        %1564 = vmatprep.subr.mxu0 0.0
        %1565 = vmatpush1.msra.mxu0 %v1032
        %1566 = vmatprep.subr.mxu0 0.0
        %1567 = vmatpush1.msra.mxu0 %v1033
        %1568 = vmatprep.subr.mxu0 0.0
        %1569 = vmatpush1.msra.mxu0 %v1034
        %1570 = vmatprep.subr.mxu0 0.0
        %1571 = vmatpush1.msra.mxu0 %v1035
        %1572 = vmatprep.subr.mxu0 0.0
        %1573 = vmatpush1.msra.mxu0 %v1036
        %1574 = vmatprep.subr.mxu0 0.0
        %1575 = vmatpush1.msra.mxu0 %v1037
        %1576 = vmatprep.subr.mxu0 0.0
        %1577 = vmatpush1.msra.mxu0 %v1038
        %1578 = vmatprep.subr.mxu0 0.0
        %1579 = vmatpush1.msra.mxu0 %v1039
        %1580 = vmatprep.subr.mxu0 0.0
        %1581 = vmatpush1.msra.mxu0 %v1040
        %1582 = vmatprep.subr.mxu0 0.0
        %1583 = vmatpush1.msra.mxu0 %v1041
        %1584 = vmatprep.subr.mxu0 0.0
        %1585 = vmatpush1.msra.mxu0 %v1042
        %1586 = vmatprep.subr.mxu0 0.0
        %1587 = vmatpush1.msra.mxu0 %v1043
        %1588 = vmatprep.subr.mxu0 0.0
        %1589 = vmatpush1.msra.mxu0 %v1044
        %1590 = vmatprep.subr.mxu0 0.0
        %1591 = vmatpush1.msra.mxu0 %v1045
        %1592 = vmatprep.subr.mxu0 0.0
        %1593 = vmatpush1.msra.mxu0 %v1046
        %1594 = vmatprep.subr.mxu0 0.0
        %1595 = vmatpush1.msra.mxu0 %v1047
        %1596 = vmatprep.subr.mxu0 0.0
        %1597 = vmatpush1.msra.mxu0 %v1048
        %1598 = vmatprep.subr.mxu0 0.0
        %1599 = vmatpush1.msra.mxu0 %v1049
        %1600 = vmatprep.subr.mxu0 0.0
        %1601 = vmatpush1.msra.mxu0 %v1050
        %1602 = vmatprep.subr.mxu0 0.0
        %1603 = vmatpush1.msra.mxu0 %v1051
        %1604 = vmatprep.subr.mxu0 0.0
        %1605 = vmatpush1.msra.mxu0 %v1052
        %1606 = vmatprep.subr.mxu0 0.0
        %1607 = vmatpush1.msra.mxu0 %v1053
        %1608 = vmatprep.subr.mxu0 0.0
        %1609 = vmatpush1.msra.mxu0 %v1054
        %1610 = vmatprep.subr.mxu0 0.0
        %1611 = vmatpush1.msra.mxu0 %v1055
        %1612 = vmatprep.subr.mxu0 0.0
        %1613 = vmatpush1.msra.mxu0 %v1056
        %1614 = vmatprep.subr.mxu0 0.0
        %1615 = vmatpush1.msra.mxu0 %v1057
        %1616 = vmatprep.subr.mxu0 0.0
        %1617 = vmatpush1.msra.mxu0 %v1058
        %1618 = vmatprep.subr.mxu0 0.0
        %1619 = vmatpush1.msra.mxu0 %v1059
        %1620 = vmatprep.subr.mxu0 0.0
        %1621 = vmatpush1.msra.mxu0 %v1060
        %1622 = vmatprep.subr.mxu0 0.0
        %1623 = vmatpush1.msra.mxu0 %v1061
        %1624 = vmatprep.mubr.f32.mxu0 %v1477
        %1625 = vmatmul.mubr.f32.gmra.mrb[0].mxu0 %v1475
        %v1626 = vpop.f32.mrb[0].mxu0
        %v1627 = vadd.f32 %v1552, %v1626
        %v1628 = vpop.f32.mrb[0].mxu0
        %1629 = vmatprep.mubr.f32.mxu0 %v1478
        %1630 = vmatmul.mubr.f32.gmra.mrb[0].mxu0 %v1476
        %v1631 = vpop.f32.mrb[0].mxu0
        %v1632 = vadd.f32 %v1557, %v1631
        %v1633 = vpop.f32.mrb[0].mxu0
        %1634 = vdwg.mxu0
        %1635 = vmatprep.subr.mxu0 0.0
        %1636 = vmatpush1.msra.mxu0 %v1062
        %1637 = vmatprep.subr.mxu0 0.0
        %1638 = vmatpush1.msra.mxu0 %v1063
        %1639 = vmatprep.subr.mxu0 0.0
        %1640 = vmatpush1.msra.mxu0 %v1064
        %1641 = vmatprep.subr.mxu0 0.0
        %1642 = vmatpush1.msra.mxu0 %v1065
        %1643 = vmatprep.subr.mxu0 0.0
        %1644 = vmatpush1.msra.mxu0 %v1066
        %1645 = vmatprep.subr.mxu0 0.0
        %1646 = vmatpush1.msra.mxu0 %v1067
        %1647 = vmatprep.subr.mxu0 0.0
        %1648 = vmatpush1.msra.mxu0 %v1068
        %1649 = vmatprep.subr.mxu0 0.0
        %1650 = vmatpush1.msra.mxu0 %v1069
        %1651 = vmatprep.subr.mxu0 0.0
        %1652 = vmatpush1.msra.mxu0 %v1070
        %1653 = vmatprep.subr.mxu0 0.0
        %1654 = vmatpush1.msra.mxu0 %v1071
        %1655 = vmatprep.subr.mxu0 0.0
        %1656 = vmatpush1.msra.mxu0 %v1072
        %1657 = vmatprep.subr.mxu0 0.0
        %1658 = vmatpush1.msra.mxu0 %v1073
        %1659 = vmatprep.subr.mxu0 0.0
        %1660 = vmatpush1.msra.mxu0 %v1074
        %1661 = vmatprep.subr.mxu0 0.0
        %1662 = vmatpush1.msra.mxu0 %v1075
        %1663 = vmatprep.subr.mxu0 0.0
        %1664 = vmatpush1.msra.mxu0 %v1076
        %1665 = vmatprep.subr.mxu0 0.0
        %1666 = vmatpush1.msra.mxu0 %v1077
        %1667 = vmatprep.subr.mxu0 0.0
        %1668 = vmatpush1.msra.mxu0 %v1078
        %1669 = vmatprep.subr.mxu0 0.0
        %1670 = vmatpush1.msra.mxu0 %v1079
        %1671 = vmatprep.subr.mxu0 0.0
        %1672 = vmatpush1.msra.mxu0 %v1080
        %1673 = vmatprep.subr.mxu0 0.0
        %1674 = vmatpush1.msra.mxu0 %v1081
        %1675 = vmatprep.subr.mxu0 0.0
        %1676 = vmatpush1.msra.mxu0 %v1082
        %1677 = vmatprep.subr.mxu0 0.0
        %1678 = vmatpush1.msra.mxu0 %v1083
        %1679 = vmatprep.subr.mxu0 0.0
        %1680 = vmatpush1.msra.mxu0 %v1186
        %1681 = vmatprep.subr.mxu0 0.0
        %1682 = vmatpush1.msra.mxu0 0.0
        %1683 = vmatprep.subr.mxu0 0.0
        %1684 = vmatpush1.msra.mxu0 0.0
        %1685 = vmatprep.subr.mxu0 0.0
        %1686 = vmatpush1.msra.mxu0 0.0
        %1687 = vmatprep.subr.mxu0 0.0
        %1688 = vmatpush1.msra.mxu0 0.0
        %1689 = vmatprep.subr.mxu0 0.0
        %1690 = vmatpush1.msra.mxu0 0.0
        %1691 = vmatprep.subr.mxu0 0.0
        %1692 = vmatpush1.msra.mxu0 0.0
        %1693 = vmatprep.subr.mxu0 0.0
        %1694 = vmatpush1.msra.mxu0 0.0
        %1695 = vmatprep.subr.mxu0 0.0
        %1696 = vmatpush1.msra.mxu0 0.0
        %1697 = vmatprep.subr.mxu0 0.0
        %1698 = vmatpush1.msra.mxu0 0.0
        %1699 = vmatprep.mubr.f32.mxu0 %v1481
        %1700 = vmatmul.mubr.f32.gmra.mrb[0].mxu0 %v1479
        %v1701 = vpop.f32.mrb[0].mxu0
        %v1702 = vadd.f32 %v1627, %v1701
        %v1703 = vpop.f32.mrb[0].mxu0
        %1704 = vmatprep.mubr.f32.mxu0 %v1483
        %1705 = vmatmul.mubr.f32.gmra.mrb[0].mxu0 %v1480
        %v1706 = vpop.f32.mrb[0].mxu0
        %v1707 = vadd.f32 %v1632, %v1706
        %v1708 = vpop.f32.mrb[0].mxu0
        %1709 = vdwg.mxu0
        %v1710 = vmax.f32 %v1405, %v1702
        %v1711 = vmax.f32 %v1410, %v1707
        %1714 = vrot.lane.b32.xlu0 %v1710, 112
        %v1715 = vpop.permute.xlu0 %1714
        %1716 = vrot.lane.b32.xlu0 %v1711, 112
        %v1717 = vpop.permute.xlu0 %1716
        %v1720 = vmax.f32 %v1710, %v1715
        %v1721 = vmax.f32 %v1711, %v1717
        %v1722 = vld [vmem:[%s4] sm:$0x1]
        %v1724 = vlaneseq
        %v1725 = vshrl.u32 %v1724, 7
        %v1726 = vsub.s32 0, %v1725
        %v1727 = vrot.slane %v1722, %v1726
        %v1729 = vadd.f32 %v1720, %v1727
        %v1730 = vadd.f32 %v1721, %v1727
        %v1731 = vmax.f32 %v1729, 0.0
        %v1732 = vmax.f32 %v1730, 0.0
        %v1734 = vrot.slane %v1731, 1
        %1735 = vrot.lane.b32.xlu0 %v1734, 112
        %v1736 = vpop.permute.xlu0 %1735
        %v1738 = vrot.slane %v1731, 2
        %1739 = vrot.lane.b32.xlu0 %v1738, 96
        %v1740 = vpop.permute.xlu0 %1739
        %v1742 = vrot.slane %v1731, 3
        %1743 = vrot.lane.b32.xlu0 %v1742, 80
        %v1744 = vpop.permute.xlu0 %1743
        %v1746 = vrot.slane %v1731, 4
        %1747 = vrot.lane.b32.xlu0 %v1746, 64
        %v1748 = vpop.permute.xlu0 %1747
        %v1750 = vrot.slane %v1731, 5
        %1751 = vrot.lane.b32.xlu0 %v1750, 48
        %v1752 = vpop.permute.xlu0 %1751
        %v1754 = vrot.slane %v1731, 6
        %1755 = vrot.lane.b32.xlu0 %v1754, 32
        %v1756 = vpop.permute.xlu0 %1755
        %v1758 = vrot.slane %v1731, 7
        %1759 = vrot.lane.b32.xlu0 %v1758, 16
        %v1760 = vpop.permute.xlu0 %1759
        %v1763 = vrot.slane %v1732, 1
        %1764 = vrot.lane.b32.xlu0 %v1763, 112
        %v1765 = vpop.permute.xlu0 %1764
        %v1767 = vrot.slane %v1732, 2
        %1768 = vrot.lane.b32.xlu0 %v1767, 96
        %v1769 = vpop.permute.xlu0 %1768
        %v1771 = vsel %vm474, %v1731, %v1736
        %vm1772 = vcmask 785408
        %v1773 = vsel %vm1772, %v1736, %v1740
        %vm1774 = vcmask 654336
        %v1775 = vsel %vm1774, %v1740, %v1744
        %vm1776 = vcmask 523264
        %v1777 = vsel %vm1776, %v1744, %v1748
        %vm1778 = vcmask 392192
        %v1779 = vsel %vm1778, %v1748, %v1752
        %vm1780 = vcmask 261120
        %v1781 = vsel %vm1780, %v1752, %v1756
        %vm1782 = vcmask 130048
        %v1783 = vsel %vm1782, %v1756, %v1760
        %v1784 = vsel %vm474, %v1732, %v1765
        %v1785 = vsel %vm1772, %v1765, %v1769
        %v1786 = vld [vmem:[%s5] sm:$0xff]
        %v1787 = vld [vmem:[%s5 + $0x8] sm:$0xff]
        %v1788 = vld [vmem:[%s5 + $0x10] sm:$0xff]
        %v1789 = vld [vmem:[%s5 + $0x18] sm:$0xff]
        %v1790 = vld [vmem:[%s5 + $0x20] sm:$0xff]
        %v1791 = vld [vmem:[%s5 + $0x28] sm:$0xff]
        %v1792 = vld [vmem:[%s5 + $0x30] sm:$0xff]
        %v1793 = vld [vmem:[%s5 + $0x38] sm:$0xff]
        %v1794 = vld [vmem:[%s5 + $0x40] sm:$0xff]
        %v1795 = vld [vmem:[%s5 + $0x48] sm:$0xff]
        %v1796 = vld [vmem:[%s5 + $0x50] sm:$0xff]
        %v1797 = vld [vmem:[%s5 + $0x58] sm:$0xff]
        %v1798 = vld [vmem:[%s5 + $0x60] sm:$0xff]
        %v1799 = vld [vmem:[%s5 + $0x68] sm:$0xff]
        %v1800 = vld [vmem:[%s5 + $0x70] sm:$0xff]
        %v1801 = vld [vmem:[%s5 + $0x78] sm:$0xff]
        %v1802 = vld [vmem:[%s5 + $0x80] sm:$0xff]
        %v1803 = vld [vmem:[%s5 + $0x88] sm:$0xff]
        %v1804 = vld [vmem:[%s5 + $0x90] sm:$0xff]
        %v1805 = vld [vmem:[%s5 + $0x98] sm:$0xff]
        %v1806 = vld [vmem:[%s5 + $0xa0] sm:$0xff]
        %v1807 = vld [vmem:[%s5 + $0xa8] sm:$0xff]
        %v1808 = vld [vmem:[%s5 + $0xb0] sm:$0xff]
        %v1809 = vld [vmem:[%s5 + $0xb8] sm:$0xff]
        %v1810 = vld [vmem:[%s5 + $0xc0] sm:$0xff]
        %v1811 = vld [vmem:[%s5 + $0xc8] sm:$0xff]
        %v1812 = vld [vmem:[%s5 + $0xd0] sm:$0xff]
        %v1813 = vld [vmem:[%s5 + $0xd8] sm:$0xff]
        %v1814 = vld [vmem:[%s5 + $0xe0] sm:$0xff]
        %v1815 = vld [vmem:[%s5 + $0xe8] sm:$0xff]
        %v1816 = vld [vmem:[%s5 + $0xf0] sm:$0xff]
        %v1817 = vld [vmem:[%s5 + $0xf8] sm:$0xff]
        %v1818 = vld [vmem:[%s5 + $0x100] sm:$0xff]
        %v1819 = vld [vmem:[%s5 + $0x108] sm:$0xff]
        %v1820 = vld [vmem:[%s5 + $0x110] sm:$0xff]
        %v1821 = vld [vmem:[%s5 + $0x118] sm:$0xff]
        %v1822 = vld [vmem:[%s5 + $0x120] sm:$0xff]
        %v1823 = vld [vmem:[%s5 + $0x128] sm:$0xff]
        %v1824 = vld [vmem:[%s5 + $0x130] sm:$0xff]
        %v1825 = vld [vmem:[%s5 + $0x138] sm:$0xff]
        %v1826 = vld [vmem:[%s5 + $0x140] sm:$0xff]
        %v1827 = vld [vmem:[%s5 + $0x148] sm:$0xff]
        %v1828 = vld [vmem:[%s5 + $0x150] sm:$0xff]
        %v1829 = vld [vmem:[%s5 + $0x158] sm:$0xff]
        %v1830 = vld [vmem:[%s5 + $0x160] sm:$0xff]
        %v1831 = vld [vmem:[%s5 + $0x168] sm:$0xff]
        %v1832 = vld [vmem:[%s5 + $0x170] sm:$0xff]
        %v1833 = vld [vmem:[%s5 + $0x178] sm:$0xff]
        %v1834 = vld [vmem:[%s5 + $0x180] sm:$0xff]
        %v1835 = vld [vmem:[%s5 + $0x188] sm:$0xff]
        %v1836 = vld [vmem:[%s5 + $0x190] sm:$0xff]
        %v1837 = vld [vmem:[%s5 + $0x198] sm:$0xff]
        %v1838 = vld [vmem:[%s5 + $0x1a0] sm:$0xff]
        %v1839 = vld [vmem:[%s5 + $0x1a8] sm:$0xff]
        %v1840 = vld [vmem:[%s5 + $0x1b0] sm:$0xff]
        %v1841 = vld [vmem:[%s5 + $0x1b8] sm:$0xff]
        %v1842 = vld [vmem:[%s5 + $0x1c0] sm:$0xff]
        %v1843 = vld [vmem:[%s5 + $0x1c8] sm:$0xff]
        %v1844 = vld [vmem:[%s5 + $0x1d0] sm:$0xff]
        %v1845 = vld [vmem:[%s5 + $0x1d8] sm:$0xff]
        %v1846 = vld [vmem:[%s5 + $0x1e0] sm:$0xff]
        %v1847 = vld [vmem:[%s5 + $0x1e8] sm:$0xff]
        %v1848 = vld [vmem:[%s5 + $0x1f0] sm:$0xff]
        %v1849 = vld [vmem:[%s5 + $0x1f8] sm:$0xff]
        %v1850 = vld [vmem:[%s5 + $0x200] sm:$0xff]
        %v1851 = vld [vmem:[%s5 + $0x208] sm:$0xff]
        %v1852 = vld [vmem:[%s5 + $0x210] sm:$0xff]
        %v1853 = vld [vmem:[%s5 + $0x218] sm:$0xff]
        %v1854 = vld [vmem:[%s5 + $0x220] sm:$0xff]
        %v1855 = vld [vmem:[%s5 + $0x228] sm:$0xff]
        %v1856 = vld [vmem:[%s5 + $0x230] sm:$0xff]
        %v1857 = vld [vmem:[%s5 + $0x238] sm:$0xff]
        %v1858 = vld [vmem:[%s5 + $0x240] sm:$0xff]
        %v1859 = vld [vmem:[%s5 + $0x248] sm:$0xff]
        %v1860 = vld [vmem:[%s5 + $0x250] sm:$0xff]
        %v1861 = vld [vmem:[%s5 + $0x258] sm:$0xff]
        %v1862 = vld [vmem:[%s5 + $0x260] sm:$0xff]
        %v1863 = vld [vmem:[%s5 + $0x268] sm:$0xff]
        %v1864 = vld [vmem:[%s5 + $0x270] sm:$0xff]
        %v1865 = vld [vmem:[%s5 + $0x278] sm:$0xff]
        %v1866 = vld [vmem:[%s5 + $0x280] sm:$0xff]
        %v1867 = vld [vmem:[%s5 + $0x288] sm:$0xff]
        %v1868 = vld [vmem:[%s5 + $0x290] sm:$0xff]
        %v1869 = vld [vmem:[%s5 + $0x298] sm:$0xff]
        %v1870 = vld [vmem:[%s5 + $0x2a0] sm:$0xff]
        %v1871 = vld [vmem:[%s5 + $0x2a8] sm:$0xff]
        %v1872 = vld [vmem:[%s5 + $0x2b0] sm:$0xff]
        %v1873 = vld [vmem:[%s5 + $0x2b8] sm:$0xff]
        %v1874 = vld [vmem:[%s5 + $0x2c0] sm:$0xff]
        %v1875 = vld [vmem:[%s5 + $0x2c8] sm:$0xff]
        %v1876 = vld [vmem:[%s5 + $0x2d0] sm:$0xff]
        %v1877 = vld [vmem:[%s5 + $0x2d8] sm:$0xff]
        %v1878 = vld [vmem:[%s5 + $0x2e0] sm:$0xff]
        %v1879 = vld [vmem:[%s5 + $0x2e8] sm:$0xff]
        %v1880 = vld [vmem:[%s5 + $0x2f0] sm:$0xff]
        %v1881 = vld [vmem:[%s5 + $0x2f8] sm:$0xff]
        %v1882 = vld [vmem:[%s5 + $0x300] sm:$0xff]
        %v1883 = vld [vmem:[%s5 + $0x308] sm:$0xff]
        %v1884 = vld [vmem:[%s5 + $0x310] sm:$0xff]
        %v1885 = vld [vmem:[%s5 + $0x318] sm:$0xff]
        %v1886 = vld [vmem:[%s5 + $0x320] sm:$0xff]
        %v1887 = vld [vmem:[%s5 + $0x328] sm:$0xff]
        %v1888 = vld [vmem:[%s5 + $0x330] sm:$0xff]
        %v1889 = vld [vmem:[%s5 + $0x338] sm:$0xff]
        %v1890 = vld [vmem:[%s5 + $0x340] sm:$0xff]
        %v1891 = vld [vmem:[%s5 + $0x348] sm:$0xff]
        %v1892 = vld [vmem:[%s5 + $0x350] sm:$0xff]
        %v1893 = vld [vmem:[%s5 + $0x358] sm:$0xff]
        %v1894 = vld [vmem:[%s5 + $0x360] sm:$0xff]
        %v1895 = vld [vmem:[%s5 + $0x368] sm:$0xff]
        %v1896 = vld [vmem:[%s5 + $0x370] sm:$0xff]
        %v1897 = vld [vmem:[%s5 + $0x378] sm:$0xff]
        %v1898 = vld [vmem:[%s5 + $0x380] sm:$0xff]
        %v1899 = vld [vmem:[%s5 + $0x388] sm:$0xff]
        %v1900 = vld [vmem:[%s5 + $0x390] sm:$0xff]
        %v1901 = vld [vmem:[%s5 + $0x398] sm:$0xff]
        %v1902 = vld [vmem:[%s5 + $0x3a0] sm:$0xff]
        %v1903 = vld [vmem:[%s5 + $0x3a8] sm:$0xff]
        %v1904 = vld [vmem:[%s5 + $0x3b0] sm:$0xff]
        %v1905 = vld [vmem:[%s5 + $0x3b8] sm:$0xff]
        %v1906 = vld [vmem:[%s5 + $0x3c0] sm:$0xff]
        %v1907 = vld [vmem:[%s5 + $0x3c8] sm:$0xff]
        %v1908 = vld [vmem:[%s5 + $0x3d0] sm:$0xff]
        %v1909 = vld [vmem:[%s5 + $0x3d8] sm:$0xff]
        %v1910 = vld [vmem:[%s5 + $0x3e0] sm:$0xff]
        %v1911 = vld [vmem:[%s5 + $0x3e8] sm:$0xff]
        %v1912 = vld [vmem:[%s5 + $0x3f0] sm:$0xff]
        %v1913 = vld [vmem:[%s5 + $0x3f8] sm:$0xff]
        %v1914 = vld [vmem:[%s5 + $0x400] sm:$0xff]
        %v1915 = vld [vmem:[%s5 + $0x408] sm:$0xff]
        %v1916 = vld [vmem:[%s5 + $0x410] sm:$0xff]
        %v1917 = vld [vmem:[%s5 + $0x418] sm:$0xff]
        %v1918 = vld [vmem:[%s5 + $0x420] sm:$0xff]
        %v1919 = vld [vmem:[%s5 + $0x428] sm:$0xff]
        %v1920 = vld [vmem:[%s5 + $0x430] sm:$0xff]
        %v1921 = vld [vmem:[%s5 + $0x438] sm:$0xff]
        %v1922 = vld [vmem:[%s5 + $0x440] sm:$0xff]
        %v1923 = vld [vmem:[%s5 + $0x448] sm:$0xff]
        %v1924 = vld [vmem:[%s5 + $0x450] sm:$0xff]
        %v1925 = vld [vmem:[%s5 + $0x458] sm:$0xff]
        %v1926 = vld [vmem:[%s5 + $0x460] sm:$0xff]
        %v1927 = vld [vmem:[%s5 + $0x468] sm:$0xff]
        %v1928 = vld [vmem:[%s5 + $0x470] sm:$0xff]
        %v1929 = vld [vmem:[%s5 + $0x478] sm:$0xff]
        %v1930 = vld [vmem:[%s5 + $0x480] sm:$0xff]
        %v1931 = vld [vmem:[%s5 + $0x488] sm:$0xff]
        %v1932 = vld [vmem:[%s5 + $0x490] sm:$0xff]
        %v1933 = vld [vmem:[%s5 + $0x498] sm:$0xff]
        %v1934 = vld [vmem:[%s5 + $0x4a0] sm:$0xff]
        %v1935 = vld [vmem:[%s5 + $0x4a8] sm:$0xff]
        %v1936 = vld [vmem:[%s5 + $0x4b0] sm:$0xff]
        %v1937 = vld [vmem:[%s5 + $0x4b8] sm:$0xff]
        %v1938 = vld [vmem:[%s5 + $0x4c0] sm:$0xff]
        %v1939 = vld [vmem:[%s5 + $0x4c8] sm:$0xff]
        %v1940 = vld [vmem:[%s6] sm:$0x1]
        %v1941 = vsel %vm1774, %v1769, 0
        %1943 = vmatprep.subr.mxu0 0.0
        %1944 = vmatpush1.msra.mxu0 %v1786
        %1945 = vmatprep.subr.mxu0 0.0
        %1946 = vmatpush1.msra.mxu0 %v1787
        %1947 = vmatprep.subr.mxu0 0.0
        %1948 = vmatpush1.msra.mxu0 %v1788
        %1949 = vmatprep.subr.mxu0 0.0
        %1950 = vmatpush1.msra.mxu0 %v1789
        %1951 = vmatprep.subr.mxu0 0.0
        %1952 = vmatpush1.msra.mxu0 %v1790
        %1953 = vmatprep.subr.mxu0 0.0
        %1954 = vmatpush1.msra.mxu0 %v1791
        %1955 = vmatprep.subr.mxu0 0.0
        %1956 = vmatpush1.msra.mxu0 %v1792
        %1957 = vmatprep.subr.mxu0 0.0
        %1958 = vmatpush1.msra.mxu0 %v1793
        %1959 = vmatprep.subr.mxu0 0.0
        %1960 = vmatpush1.msra.mxu0 %v1794
        %1961 = vmatprep.subr.mxu0 0.0
        %1962 = vmatpush1.msra.mxu0 %v1795
        %1963 = vmatprep.subr.mxu0 0.0
        %1964 = vmatpush1.msra.mxu0 %v1796
        %1965 = vmatprep.subr.mxu0 0.0
        %1966 = vmatpush1.msra.mxu0 %v1797
        %1967 = vmatprep.subr.mxu0 0.0
        %1968 = vmatpush1.msra.mxu0 %v1798
        %1969 = vmatprep.subr.mxu0 0.0
        %1970 = vmatpush1.msra.mxu0 %v1799
        %1971 = vmatprep.subr.mxu0 0.0
        %1972 = vmatpush1.msra.mxu0 %v1800
        %1973 = vmatprep.subr.mxu0 0.0
        %1974 = vmatpush1.msra.mxu0 %v1801
        %1975 = vmatprep.subr.mxu0 0.0
        %1976 = vmatpush1.msra.mxu0 %v1802
        %1977 = vmatprep.subr.mxu0 0.0
        %1978 = vmatpush1.msra.mxu0 %v1803
        %1979 = vmatprep.subr.mxu0 0.0
        %1980 = vmatpush1.msra.mxu0 %v1804
        %1981 = vmatprep.subr.mxu0 0.0
        %1982 = vmatpush1.msra.mxu0 %v1805
        %1983 = vmatprep.subr.mxu0 0.0
        %1984 = vmatpush1.msra.mxu0 %v1806
        %1985 = vmatprep.subr.mxu0 0.0
        %1986 = vmatpush1.msra.mxu0 %v1807
        %1987 = vmatprep.subr.mxu0 0.0
        %1988 = vmatpush1.msra.mxu0 %v1808
        %1989 = vmatprep.subr.mxu0 0.0
        %1990 = vmatpush1.msra.mxu0 %v1809
        %1991 = vmatprep.subr.mxu0 0.0
        %1992 = vmatpush1.msra.mxu0 %v1810
        %1993 = vmatprep.subr.mxu0 0.0
        %1994 = vmatpush1.msra.mxu0 %v1811
        %1995 = vmatprep.subr.mxu0 0.0
        %1996 = vmatpush1.msra.mxu0 %v1812
        %1997 = vmatprep.subr.mxu0 0.0
        %1998 = vmatpush1.msra.mxu0 %v1813
        %1999 = vmatprep.subr.mxu0 0.0
        %2000 = vmatpush1.msra.mxu0 %v1814
        %2001 = vmatprep.subr.mxu0 0.0
        %2002 = vmatpush1.msra.mxu0 %v1815
        %2003 = vmatprep.subr.mxu0 0.0
        %2004 = vmatpush1.msra.mxu0 %v1816
        %2005 = vmatprep.subr.mxu0 0.0
        %2006 = vmatpush1.msra.mxu0 %v1817
        %2007 = vmatprep.mubr.f32.mxu0 %v1773
        %2008 = vmatmul.mubr.f32.gmra.mrb[0].mxu0 %v1771
        %v2009 = vpop.f32.mrb[0].mxu0
        %v2010 = vadd.f32 %v1940, %v2009
        %v2011 = vpop.f32.mrb[0].mxu0
        %2012 = vdwg.mxu0
        %2013 = vmatprep.subr.mxu0 0.0
        %2014 = vmatpush1.msra.mxu0 %v1818
        %2015 = vmatprep.subr.mxu0 0.0
        %2016 = vmatpush1.msra.mxu0 %v1819
        %2017 = vmatprep.subr.mxu0 0.0
        %2018 = vmatpush1.msra.mxu0 %v1820
        %2019 = vmatprep.subr.mxu0 0.0
        %2020 = vmatpush1.msra.mxu0 %v1821
        %2021 = vmatprep.subr.mxu0 0.0
        %2022 = vmatpush1.msra.mxu0 %v1822
        %2023 = vmatprep.subr.mxu0 0.0
        %2024 = vmatpush1.msra.mxu0 %v1823
        %2025 = vmatprep.subr.mxu0 0.0
        %2026 = vmatpush1.msra.mxu0 %v1824
        %2027 = vmatprep.subr.mxu0 0.0
        %2028 = vmatpush1.msra.mxu0 %v1825
        %2029 = vmatprep.subr.mxu0 0.0
        %2030 = vmatpush1.msra.mxu0 %v1826
        %2031 = vmatprep.subr.mxu0 0.0
        %2032 = vmatpush1.msra.mxu0 %v1827
        %2033 = vmatprep.subr.mxu0 0.0
        %2034 = vmatpush1.msra.mxu0 %v1828
        %2035 = vmatprep.subr.mxu0 0.0
        %2036 = vmatpush1.msra.mxu0 %v1829
        %2037 = vmatprep.subr.mxu0 0.0
        %2038 = vmatpush1.msra.mxu0 %v1830
        %2039 = vmatprep.subr.mxu0 0.0
        %2040 = vmatpush1.msra.mxu0 %v1831
        %2041 = vmatprep.subr.mxu0 0.0
        %2042 = vmatpush1.msra.mxu0 %v1832
        %2043 = vmatprep.subr.mxu0 0.0
        %2044 = vmatpush1.msra.mxu0 %v1833
        %2045 = vmatprep.subr.mxu0 0.0
        %2046 = vmatpush1.msra.mxu0 %v1834
        %2047 = vmatprep.subr.mxu0 0.0
        %2048 = vmatpush1.msra.mxu0 %v1835
        %2049 = vmatprep.subr.mxu0 0.0
        %2050 = vmatpush1.msra.mxu0 %v1836
        %2051 = vmatprep.subr.mxu0 0.0
        %2052 = vmatpush1.msra.mxu0 %v1837
        %2053 = vmatprep.subr.mxu0 0.0
        %2054 = vmatpush1.msra.mxu0 %v1838
        %2055 = vmatprep.subr.mxu0 0.0
        %2056 = vmatpush1.msra.mxu0 %v1839
        %2057 = vmatprep.subr.mxu0 0.0
        %2058 = vmatpush1.msra.mxu0 %v1840
        %2059 = vmatprep.subr.mxu0 0.0
        %2060 = vmatpush1.msra.mxu0 %v1841
        %2061 = vmatprep.subr.mxu0 0.0
        %2062 = vmatpush1.msra.mxu0 %v1842
        %2063 = vmatprep.subr.mxu0 0.0
        %2064 = vmatpush1.msra.mxu0 %v1843
        %2065 = vmatprep.subr.mxu0 0.0
        %2066 = vmatpush1.msra.mxu0 %v1844
        %2067 = vmatprep.subr.mxu0 0.0
        %2068 = vmatpush1.msra.mxu0 %v1845
        %2069 = vmatprep.subr.mxu0 0.0
        %2070 = vmatpush1.msra.mxu0 %v1846
        %2071 = vmatprep.subr.mxu0 0.0
        %2072 = vmatpush1.msra.mxu0 %v1847
        %2073 = vmatprep.subr.mxu0 0.0
        %2074 = vmatpush1.msra.mxu0 %v1848
        %2075 = vmatprep.subr.mxu0 0.0
        %2076 = vmatpush1.msra.mxu0 %v1849
        %2077 = vmatprep.mubr.f32.mxu0 %v1777
        %2078 = vmatmul.mubr.f32.gmra.mrb[0].mxu0 %v1775
        %v2079 = vpop.f32.mrb[0].mxu0
        %v2080 = vadd.f32 %v2010, %v2079
        %v2081 = vpop.f32.mrb[0].mxu0
        %2082 = vdwg.mxu0
        %2083 = vmatprep.subr.mxu0 0.0
        %2084 = vmatpush1.msra.mxu0 %v1850
        %2085 = vmatprep.subr.mxu0 0.0
        %2086 = vmatpush1.msra.mxu0 %v1851
        %2087 = vmatprep.subr.mxu0 0.0
        %2088 = vmatpush1.msra.mxu0 %v1852
        %2089 = vmatprep.subr.mxu0 0.0
        %2090 = vmatpush1.msra.mxu0 %v1853
        %2091 = vmatprep.subr.mxu0 0.0
        %2092 = vmatpush1.msra.mxu0 %v1854
        %2093 = vmatprep.subr.mxu0 0.0
        %2094 = vmatpush1.msra.mxu0 %v1855
        %2095 = vmatprep.subr.mxu0 0.0
        %2096 = vmatpush1.msra.mxu0 %v1856
        %2097 = vmatprep.subr.mxu0 0.0
        %2098 = vmatpush1.msra.mxu0 %v1857
        %2099 = vmatprep.subr.mxu0 0.0
        %2100 = vmatpush1.msra.mxu0 %v1858
        %2101 = vmatprep.subr.mxu0 0.0
        %2102 = vmatpush1.msra.mxu0 %v1859
        %2103 = vmatprep.subr.mxu0 0.0
        %2104 = vmatpush1.msra.mxu0 %v1860
        %2105 = vmatprep.subr.mxu0 0.0
        %2106 = vmatpush1.msra.mxu0 %v1861
        %2107 = vmatprep.subr.mxu0 0.0
        %2108 = vmatpush1.msra.mxu0 %v1862
        %2109 = vmatprep.subr.mxu0 0.0
        %2110 = vmatpush1.msra.mxu0 %v1863
        %2111 = vmatprep.subr.mxu0 0.0
        %2112 = vmatpush1.msra.mxu0 %v1864
        %2113 = vmatprep.subr.mxu0 0.0
        %2114 = vmatpush1.msra.mxu0 %v1865
        %2115 = vmatprep.subr.mxu0 0.0
        %2116 = vmatpush1.msra.mxu0 %v1866
        %2117 = vmatprep.subr.mxu0 0.0
        %2118 = vmatpush1.msra.mxu0 %v1867
        %2119 = vmatprep.subr.mxu0 0.0
        %2120 = vmatpush1.msra.mxu0 %v1868
        %2121 = vmatprep.subr.mxu0 0.0
        %2122 = vmatpush1.msra.mxu0 %v1869
        %2123 = vmatprep.subr.mxu0 0.0
        %2124 = vmatpush1.msra.mxu0 %v1870
        %2125 = vmatprep.subr.mxu0 0.0
        %2126 = vmatpush1.msra.mxu0 %v1871
        %2127 = vmatprep.subr.mxu0 0.0
        %2128 = vmatpush1.msra.mxu0 %v1872
        %2129 = vmatprep.subr.mxu0 0.0
        %2130 = vmatpush1.msra.mxu0 %v1873
        %2131 = vmatprep.subr.mxu0 0.0
        %2132 = vmatpush1.msra.mxu0 %v1874
        %2133 = vmatprep.subr.mxu0 0.0
        %2134 = vmatpush1.msra.mxu0 %v1875
        %2135 = vmatprep.subr.mxu0 0.0
        %2136 = vmatpush1.msra.mxu0 %v1876
        %2137 = vmatprep.subr.mxu0 0.0
        %2138 = vmatpush1.msra.mxu0 %v1877
        %2139 = vmatprep.subr.mxu0 0.0
        %2140 = vmatpush1.msra.mxu0 %v1878
        %2141 = vmatprep.subr.mxu0 0.0
        %2142 = vmatpush1.msra.mxu0 %v1879
        %2143 = vmatprep.subr.mxu0 0.0
        %2144 = vmatpush1.msra.mxu0 %v1880
        %2145 = vmatprep.subr.mxu0 0.0
        %2146 = vmatpush1.msra.mxu0 %v1881
        %2147 = vmatprep.mubr.f32.mxu0 %v1781
        %2148 = vmatmul.mubr.f32.gmra.mrb[0].mxu0 %v1779
        %v2149 = vpop.f32.mrb[0].mxu0
        %v2150 = vadd.f32 %v2080, %v2149
        %v2151 = vpop.f32.mrb[0].mxu0
        %2152 = vdwg.mxu0
        %2153 = vmatprep.subr.mxu0 0.0
        %2154 = vmatpush1.msra.mxu0 %v1882
        %2155 = vmatprep.subr.mxu0 0.0
        %2156 = vmatpush1.msra.mxu0 %v1883
        %2157 = vmatprep.subr.mxu0 0.0
        %2158 = vmatpush1.msra.mxu0 %v1884
        %2159 = vmatprep.subr.mxu0 0.0
        %2160 = vmatpush1.msra.mxu0 %v1885
        %2161 = vmatprep.subr.mxu0 0.0
        %2162 = vmatpush1.msra.mxu0 %v1886
        %2163 = vmatprep.subr.mxu0 0.0
        %2164 = vmatpush1.msra.mxu0 %v1887
        %2165 = vmatprep.subr.mxu0 0.0
        %2166 = vmatpush1.msra.mxu0 %v1888
        %2167 = vmatprep.subr.mxu0 0.0
        %2168 = vmatpush1.msra.mxu0 %v1889
        %2169 = vmatprep.subr.mxu0 0.0
        %2170 = vmatpush1.msra.mxu0 %v1890
        %2171 = vmatprep.subr.mxu0 0.0
        %2172 = vmatpush1.msra.mxu0 %v1891
        %2173 = vmatprep.subr.mxu0 0.0
        %2174 = vmatpush1.msra.mxu0 %v1892
        %2175 = vmatprep.subr.mxu0 0.0
        %2176 = vmatpush1.msra.mxu0 %v1893
        %2177 = vmatprep.subr.mxu0 0.0
        %2178 = vmatpush1.msra.mxu0 %v1894
        %2179 = vmatprep.subr.mxu0 0.0
        %2180 = vmatpush1.msra.mxu0 %v1895
        %2181 = vmatprep.subr.mxu0 0.0
        %2182 = vmatpush1.msra.mxu0 %v1896
        %2183 = vmatprep.subr.mxu0 0.0
        %2184 = vmatpush1.msra.mxu0 %v1897
        %2185 = vmatprep.subr.mxu0 0.0
        %2186 = vmatpush1.msra.mxu0 %v1898
        %2187 = vmatprep.subr.mxu0 0.0
        %2188 = vmatpush1.msra.mxu0 %v1899
        %2189 = vmatprep.subr.mxu0 0.0
        %2190 = vmatpush1.msra.mxu0 %v1900
        %2191 = vmatprep.subr.mxu0 0.0
        %2192 = vmatpush1.msra.mxu0 %v1901
        %2193 = vmatprep.subr.mxu0 0.0
        %2194 = vmatpush1.msra.mxu0 %v1902
        %2195 = vmatprep.subr.mxu0 0.0
        %2196 = vmatpush1.msra.mxu0 %v1903
        %2197 = vmatprep.subr.mxu0 0.0
        %2198 = vmatpush1.msra.mxu0 %v1904
        %2199 = vmatprep.subr.mxu0 0.0
        %2200 = vmatpush1.msra.mxu0 %v1905
        %2201 = vmatprep.subr.mxu0 0.0
        %2202 = vmatpush1.msra.mxu0 %v1906
        %2203 = vmatprep.subr.mxu0 0.0
        %2204 = vmatpush1.msra.mxu0 %v1907
        %2205 = vmatprep.subr.mxu0 0.0
        %2206 = vmatpush1.msra.mxu0 %v1908
        %2207 = vmatprep.subr.mxu0 0.0
        %2208 = vmatpush1.msra.mxu0 %v1909
        %2209 = vmatprep.subr.mxu0 0.0
        %2210 = vmatpush1.msra.mxu0 %v1910
        %2211 = vmatprep.subr.mxu0 0.0
        %2212 = vmatpush1.msra.mxu0 %v1911
        %2213 = vmatprep.subr.mxu0 0.0
        %2214 = vmatpush1.msra.mxu0 %v1912
        %2215 = vmatprep.subr.mxu0 0.0
        %2216 = vmatpush1.msra.mxu0 %v1913
        %2217 = vmatprep.mubr.f32.mxu0 %v1784
        %2218 = vmatmul.mubr.f32.gmra.mrb[0].mxu0 %v1783
        %v2219 = vpop.f32.mrb[0].mxu0
        %v2220 = vadd.f32 %v2150, %v2219
        %v2221 = vpop.f32.mrb[0].mxu0
        %2222 = vdwg.mxu0
        %2223 = vmatprep.subr.mxu0 0.0
        %2224 = vmatpush1.msra.mxu0 %v1914
        %2225 = vmatprep.subr.mxu0 0.0
        %2226 = vmatpush1.msra.mxu0 %v1915
        %2227 = vmatprep.subr.mxu0 0.0
        %2228 = vmatpush1.msra.mxu0 %v1916
        %2229 = vmatprep.subr.mxu0 0.0
        %2230 = vmatpush1.msra.mxu0 %v1917
        %2231 = vmatprep.subr.mxu0 0.0
        %2232 = vmatpush1.msra.mxu0 %v1918
        %2233 = vmatprep.subr.mxu0 0.0
        %2234 = vmatpush1.msra.mxu0 %v1919
        %2235 = vmatprep.subr.mxu0 0.0
        %2236 = vmatpush1.msra.mxu0 %v1920
        %2237 = vmatprep.subr.mxu0 0.0
        %2238 = vmatpush1.msra.mxu0 %v1921
        %2239 = vmatprep.subr.mxu0 0.0
        %2240 = vmatpush1.msra.mxu0 %v1922
        %2241 = vmatprep.subr.mxu0 0.0
        %2242 = vmatpush1.msra.mxu0 %v1923
        %2243 = vmatprep.subr.mxu0 0.0
        %2244 = vmatpush1.msra.mxu0 %v1924
        %2245 = vmatprep.subr.mxu0 0.0
        %2246 = vmatpush1.msra.mxu0 %v1925
        %2247 = vmatprep.subr.mxu0 0.0
        %2248 = vmatpush1.msra.mxu0 %v1926
        %2249 = vmatprep.subr.mxu0 0.0
        %2250 = vmatpush1.msra.mxu0 %v1927
        %2251 = vmatprep.subr.mxu0 0.0
        %2252 = vmatpush1.msra.mxu0 %v1928
        %2253 = vmatprep.subr.mxu0 0.0
        %2254 = vmatpush1.msra.mxu0 %v1929
        %2255 = vmatprep.subr.mxu0 0.0
        %2256 = vmatpush1.msra.mxu0 %v1930
        %2257 = vmatprep.subr.mxu0 0.0
        %2258 = vmatpush1.msra.mxu0 %v1931
        %2259 = vmatprep.subr.mxu0 0.0
        %2260 = vmatpush1.msra.mxu0 %v1932
        %2261 = vmatprep.subr.mxu0 0.0
        %2262 = vmatpush1.msra.mxu0 %v1933
        %2263 = vmatprep.subr.mxu0 0.0
        %2264 = vmatpush1.msra.mxu0 %v1934
        %2265 = vmatprep.subr.mxu0 0.0
        %2266 = vmatpush1.msra.mxu0 %v1935
        %2267 = vmatprep.subr.mxu0 0.0
        %2268 = vmatpush1.msra.mxu0 %v1936
        %2269 = vmatprep.subr.mxu0 0.0
        %2270 = vmatpush1.msra.mxu0 %v1937
        %2271 = vmatprep.subr.mxu0 0.0
        %2272 = vmatpush1.msra.mxu0 %v1938
        %2273 = vmatprep.subr.mxu0 0.0
        %2274 = vmatpush1.msra.mxu0 %v1939
        %2275 = vmatprep.subr.mxu0 0.0
        %2276 = vmatpush1.msra.mxu0 0.0
        %2277 = vmatprep.subr.mxu0 0.0
        %2278 = vmatpush1.msra.mxu0 0.0
        %2279 = vmatprep.subr.mxu0 0.0
        %2280 = vmatpush1.msra.mxu0 0.0
        %2281 = vmatprep.subr.mxu0 0.0
        %2282 = vmatpush1.msra.mxu0 0.0
        %2283 = vmatprep.subr.mxu0 0.0
        %2284 = vmatpush1.msra.mxu0 0.0
        %2285 = vmatprep.subr.mxu0 0.0
        %2286 = vmatpush1.msra.mxu0 0.0
        %2287 = vmatprep.mubr.f32.mxu0 %v1941
        %2288 = vmatmul.mubr.f32.gmra.mrb[0].mxu0 %v1785
        %v2289 = vpop.f32.mrb[0].mxu0
        %v2290 = vadd.f32 %v2220, %v2289
        %v2291 = vpop.f32.mrb[0].mxu0
        %2292 = vdwg.mxu0
        %v2293 = vmax.f32 %v2290, 0.0
        %v2294 = vld [vmem:[%s7] sm:$0xff]
        %v2295 = vld [vmem:[%s7 + $0x8] sm:$0xff]
        %v2296 = vld [vmem:[%s7 + $0x10] sm:$0xff]
        %v2297 = vld [vmem:[%s7 + $0x18] sm:$0xff]
        %v2298 = vld [vmem:[%s7 + $0x20] sm:$0xff]
        %v2299 = vld [vmem:[%s7 + $0x28] sm:$0xff]
        %v2300 = vld [vmem:[%s7 + $0x30] sm:$0xff]
        %v2301 = vld [vmem:[%s7 + $0x38] sm:$0xff]
        %v2302 = vld [vmem:[%s7 + $0x40] sm:$0xff]
        %v2303 = vld [vmem:[%s7 + $0x48] sm:$0xff]
        %v2304 = vld [vmem:[%s7 + $0x50] sm:$0xff]
        %v2305 = vld [vmem:[%s7 + $0x58] sm:$0xff]
        %v2306 = vld [vmem:[%s7 + $0x60] sm:$0xff]
        %v2307 = vld [vmem:[%s7 + $0x68] sm:$0xff]
        %v2308 = vld [vmem:[%s7 + $0x70] sm:$0xff]
        %v2309 = vld [vmem:[%s8] sm:$0x1]
        %vm2310 = vcmask 982016
        %v2312 = vsel %vm2310, %v2293, 0
        %2314 = vmatprep.subr.mxu0 0.0
        %2315 = vmatpush1.msra.mxu0 %v2294
        %2316 = vmatprep.subr.mxu0 0.0
        %2317 = vmatpush1.msra.mxu0 %v2295
        %2318 = vmatprep.subr.mxu0 0.0
        %2319 = vmatpush1.msra.mxu0 %v2296
        %2320 = vmatprep.subr.mxu0 0.0
        %2321 = vmatpush1.msra.mxu0 %v2297
        %2322 = vmatprep.subr.mxu0 0.0
        %2323 = vmatpush1.msra.mxu0 %v2298
        %2324 = vmatprep.subr.mxu0 0.0
        %2325 = vmatpush1.msra.mxu0 %v2299
        %2326 = vmatprep.subr.mxu0 0.0
        %2327 = vmatpush1.msra.mxu0 %v2300
        %2328 = vmatprep.subr.mxu0 0.0
        %2329 = vmatpush1.msra.mxu0 %v2301
        %2330 = vmatprep.subr.mxu0 0.0
        %2331 = vmatpush1.msra.mxu0 %v2302
        %2332 = vmatprep.subr.mxu0 0.0
        %2333 = vmatpush1.msra.mxu0 %v2303
        %2334 = vmatprep.subr.mxu0 0.0
        %2335 = vmatpush1.msra.mxu0 %v2304
        %2336 = vmatprep.subr.mxu0 0.0
        %2337 = vmatpush1.msra.mxu0 %v2305
        %2338 = vmatprep.subr.mxu0 0.0
        %2339 = vmatpush1.msra.mxu0 %v2306
        %2340 = vmatprep.subr.mxu0 0.0
        %2341 = vmatpush1.msra.mxu0 %v2307
        %2342 = vmatprep.subr.mxu0 0.0
        %2343 = vmatpush1.msra.mxu0 %v2308
        %2344 = vmatprep.subr.mxu0 0.0
        %2345 = vmatpush1.msra.mxu0 0.0
        %2346 = vmatprep.subr.mxu0 0.0
        %2347 = vmatpush1.msra.mxu0 0.0
        %2348 = vmatprep.subr.mxu0 0.0
        %2349 = vmatpush1.msra.mxu0 0.0
        %2350 = vmatprep.subr.mxu0 0.0
        %2351 = vmatpush1.msra.mxu0 0.0
        %2352 = vmatprep.subr.mxu0 0.0
        %2353 = vmatpush1.msra.mxu0 0.0
        %2354 = vmatprep.subr.mxu0 0.0
        %2355 = vmatpush1.msra.mxu0 0.0
        %2356 = vmatprep.subr.mxu0 0.0
        %2357 = vmatpush1.msra.mxu0 0.0
        %2358 = vmatprep.subr.mxu0 0.0
        %2359 = vmatpush1.msra.mxu0 0.0
        %2360 = vmatprep.subr.mxu0 0.0
        %2361 = vmatpush1.msra.mxu0 0.0
        %2362 = vmatprep.subr.mxu0 0.0
        %2363 = vmatpush1.msra.mxu0 0.0
        %2364 = vmatprep.subr.mxu0 0.0
        %2365 = vmatpush1.msra.mxu0 0.0
        %2366 = vmatprep.subr.mxu0 0.0
        %2367 = vmatpush1.msra.mxu0 0.0
        %2368 = vmatprep.subr.mxu0 0.0
        %2369 = vmatpush1.msra.mxu0 0.0
        %2370 = vmatprep.subr.mxu0 0.0
        %2371 = vmatpush1.msra.mxu0 0.0
        %2372 = vmatprep.subr.mxu0 0.0
        %2373 = vmatpush1.msra.mxu0 0.0
        %2374 = vmatprep.subr.mxu0 0.0
        %2375 = vmatpush1.msra.mxu0 0.0
        %2376 = vmatprep.subr.mxu0 0.0
        %2377 = vmatpush1.msra.mxu0 0.0
        %2378 = vmatprep.mubr.f32.mxu0 0.0
        %2379 = vmatmul.mubr.f32.gmra.mrb[0].mxu0 %v2312
        %v2380 = vpop.f32.mrb[0].mxu0
        %v2381 = vadd.f32 %v2309, %v2380
        %v2382 = vpop.f32.mrb[0].mxu0
        %2383 = vdwg.mxu0
        %v2384 = vmax.f32 %v2381, 0.0
        %v2385 = vld [vmem:[%s9] sm:$0xff]
        %v2386 = vld [vmem:[%s9 + $0x8] sm:$0xff]
        %v2387 = vld [vmem:[%s9 + $0x10] sm:$0xff]
        %v2388 = vld [vmem:[%s9 + $0x18] sm:$0xff]
        %v2389 = vld [vmem:[%s9 + $0x20] sm:$0xff]
        %v2390 = vld [vmem:[%s9 + $0x28] sm:$0xff]
        %v2391 = vld [vmem:[%s9 + $0x30] sm:$0xff]
        %v2392 = vld [vmem:[%s9 + $0x38] sm:$0xff]
        %v2393 = vld [vmem:[%s9 + $0x40] sm:$0xff]
        %v2394 = vld [vmem:[%s9 + $0x48] sm:$0xff]
        %v2395 = vld [vmem:[%s9 + $0x50] sm:$0xf]
        %v2396 = vld [vmem:[%s10] sm:$0x1]
        %v2398 = vsel %vm471, %v2384, 0
        %v2401 = vsel %vm482, %v2395, 0
        %2403 = vmatprep.subr.mxu0 0.0
        %2404 = vmatpush1.msra.mxu0 %v2385
        %2405 = vmatprep.subr.mxu0 0.0
        %2406 = vmatpush1.msra.mxu0 %v2386
        %2407 = vmatprep.subr.mxu0 0.0
        %2408 = vmatpush1.msra.mxu0 %v2387
        %2409 = vmatprep.subr.mxu0 0.0
        %2410 = vmatpush1.msra.mxu0 %v2388
        %2411 = vmatprep.subr.mxu0 0.0
        %2412 = vmatpush1.msra.mxu0 %v2389
        %2413 = vmatprep.subr.mxu0 0.0
        %2414 = vmatpush1.msra.mxu0 %v2390
        %2415 = vmatprep.subr.mxu0 0.0
        %2416 = vmatpush1.msra.mxu0 %v2391
        %2417 = vmatprep.subr.mxu0 0.0
        %2418 = vmatpush1.msra.mxu0 %v2392
        %2419 = vmatprep.subr.mxu0 0.0
        %2420 = vmatpush1.msra.mxu0 %v2393
        %2421 = vmatprep.subr.mxu0 0.0
        %2422 = vmatpush1.msra.mxu0 %v2394
        %2423 = vmatprep.subr.mxu0 0.0
        %2424 = vmatpush1.msra.mxu0 %v2401
        %2425 = vmatprep.subr.mxu0 0.0
        %2426 = vmatpush1.msra.mxu0 0.0
        %2427 = vmatprep.subr.mxu0 0.0
        %2428 = vmatpush1.msra.mxu0 0.0
        %2429 = vmatprep.subr.mxu0 0.0
        %2430 = vmatpush1.msra.mxu0 0.0
        %2431 = vmatprep.subr.mxu0 0.0
        %2432 = vmatpush1.msra.mxu0 0.0
        %2433 = vmatprep.subr.mxu0 0.0
        %2434 = vmatpush1.msra.mxu0 0.0
        %2435 = vmatprep.subr.mxu0 0.0
        %2436 = vmatpush1.msra.mxu0 0.0
        %2437 = vmatprep.subr.mxu0 0.0
        %2438 = vmatpush1.msra.mxu0 0.0
        %2439 = vmatprep.subr.mxu0 0.0
        %2440 = vmatpush1.msra.mxu0 0.0
        %2441 = vmatprep.subr.mxu0 0.0
        %2442 = vmatpush1.msra.mxu0 0.0
        %2443 = vmatprep.subr.mxu0 0.0
        %2444 = vmatpush1.msra.mxu0 0.0
        %2445 = vmatprep.subr.mxu0 0.0
        %2446 = vmatpush1.msra.mxu0 0.0
        %2447 = vmatprep.subr.mxu0 0.0
        %2448 = vmatpush1.msra.mxu0 0.0
        %2449 = vmatprep.subr.mxu0 0.0
        %2450 = vmatpush1.msra.mxu0 0.0
        %2451 = vmatprep.subr.mxu0 0.0
        %2452 = vmatpush1.msra.mxu0 0.0
        %2453 = vmatprep.subr.mxu0 0.0
        %2454 = vmatpush1.msra.mxu0 0.0
        %2455 = vmatprep.subr.mxu0 0.0
        %2456 = vmatpush1.msra.mxu0 0.0
        %2457 = vmatprep.subr.mxu0 0.0
        %2458 = vmatpush1.msra.mxu0 0.0
        %2459 = vmatprep.subr.mxu0 0.0
        %2460 = vmatpush1.msra.mxu0 0.0
        %2461 = vmatprep.subr.mxu0 0.0
        %2462 = vmatpush1.msra.mxu0 0.0
        %2463 = vmatprep.subr.mxu0 0.0
        %2464 = vmatpush1.msra.mxu0 0.0
        %2465 = vmatprep.subr.mxu0 0.0
        %2466 = vmatpush1.msra.mxu0 0.0
        %2467 = vmatprep.mubr.f32.mxu0 0.0
        %2468 = vmatmul.mubr.f32.gmra.mrb[0].mxu0 %v2398
        %v2469 = vpop.f32.mrb[0].mxu0
        %v2470 = vadd.f32 %v2396, %v2469
        %v2471 = vpop.f32.mrb[0].mxu0
        %2472 = vdwg.mxu0
        %vm2473 = vcmask 147456
        %v2474 = vsel %vm2473, %v2470, -inf
        %2475 = vmax.xlane.f32.xlu0 %v2474
        %v2476 = vpop.xlane.xlu0 %2475
        %v2477 = vsub.f32 %v2470, %v2476
        %v2478 = vmul.f32 %v2477, 1.442695
        %v2479 = vpow.pop %v2478
        %v2480 = vsel %vm2473, %v2479, 0.0
        %2481 = vadd.xlane.f32.xlu0 %v2480
        %v2482 = vpop.xlane.xlu0 %2481
        %v2483 = vlog2.pop %v2482
        %v2484 = vmul.f32 %v2483, 0.6931472
        %v2485 = vsub.f32 %v2477, %v2484
        %2486 = vst.msk [vmem:[%s378] sm:$0x1] %vm2473, %v2485
        %s2487 = sand.u32 %s269, 1
        %s2488 = scalar_lea.sflag [#allocation3], %s2487
        %s2489 = sand.u32 %s269, 1
        %s2490 = scalar_lea.vmem [#allocation2], %s2489
        // Predicated region
        $region65: #{net_forward.1} parent=63 // pred_check
          %p2491 = pneg %p279
        $region66: #{net_forward.1} parent=63 // pred_check_branch
          %2493 = sbr.rel (%p2491) target = $region68
        $region67: #{net_forward.1} parent=63 // pred_region
          %s2495 = ssub.s32 16, 16
          %2496 = vsyncadd %s2488, %s2495
          %s2497 = smul.addr %s25, 16
          %s2498 = scalar_lea.hbm %s11, %s2497
          %s2500 = sshll.u32 %s2490, 4
          %s2501 = int_to_ptr.vmem [resolvable:$true] %s2500
          %2503 = dma.vmem_to_hbm [thread:$0]  %s2501, 16, %s2498, %s2488
        $region68: #{net_forward.1} parent=63 // pred_fallthru
          _
      $region64: #{net_forward.1} parent=5 // pred_fallthru
        _
      %p2504 = scmp.le.s32.totalorder 2, %s20
      // Predicated region
      $region69: #{net_forward.1} parent=5 // pred_check
        %p2505 = pneg %p2504
      $region70: #{net_forward.1} parent=5 // pred_check_branch
        %2507 = sbr.rel (%p2505) target = $region72
      $region71: #{net_forward.1} parent=5 // pred_region
        %s2508 = ssub.s32 %s20, 2
        // Predicated region
        $region73: #{net_forward.1} parent=71 // pred_check
          %p2509 = pneg %p285
        $region74: #{net_forward.1} parent=71 // pred_check_branch
          %2511 = sbr.rel (%p2509) target = $region76
        $region75: #{net_forward.1} parent=71 // pred_region
          %s2512 = sand.u32 %s270, 1
          %s2513 = scalar_lea.sflag [#allocation3], %s2512
          %s2514 = sand.u32 %s270, 1
          %s2515 = scalar_lea.vmem [#allocation2], %s2514
          %2516 = dma.done %s2513, 16
        $region76: #{net_forward.1} parent=71 // pred_fallthru
          _
      $region72: #{net_forward.1} parent=5 // pred_fallthru
        _
    $region6: #{net_forward.1} parent=1 // loop_footer
      %s24 = sadd.s32 1, %s20
    $region7: #{net_forward.1} parent=1 // loop_footer_branch
      %19 = sbr.rel target = $region3
    $region8: #{net_forward.1} parent=1 // loop_exit
      _
    %2517 = vsyncpa [#allocation3], 1
    %s2518 = scalar_lea.sflag [#allocation3], 1
    %2519 = vsyncpa %s2518, 1

</llo_original>
